<compile_context>
chip_gen: v5e
topology: v5e:2x2
jax: 0.10.0
libtpu: 0.0.40
codegen_flags: <defaults>
</compile_context>

<pallas_src>
import math
from functools import partial

import jax
import jax.numpy as jnp
from jax.experimental import pallas as pl
from jax.experimental.pallas import tpu as pltpu

HIDDEN_DIM = 128
INPUT_DIM = 28
OUTPUT_DIM = 18
OUT_PAD = 128   # lane-padded FC output width


def lstm_fc_kernel(x_ref, wx_ref, wh_ref, b_ref, wf_ref, bf_ref,
                   out_ref, xw_ref):
    """LSTM unroll (time-major, whole batch resident) + lane-padded FC.

    x_ref:  (T*B, D)  f32   time-major flattened input
    wx_ref: (D, 4H)   bf16  x2h weight, gate columns permuted to (i, f, o, g)
    wh_ref: (H, 4H)   bf16  h2h weight, same permutation
    b_ref:  (1, 4H)   f32   combined bias (bx + bh), same permutation
    wf_ref: (H, 128)  f32   fc weight, padded to full lane width
    bf_ref: (1, 128)  f32   fc bias, padded
    out_ref:(B, 128)  f32   fc(h_T), padded (wrapper slices [:, :O])
    xw_ref: ((T-1)*B, 4H) f32 scratch for the hoisted input projection (t>=1)
    """
    TB, _ = x_ref.shape
    H = wh_ref.shape[0]
    B = out_ref.shape[0]
    T = TB // B

    wx = wx_ref[...]                      # bf16 (D, 4H)
    wh = wh_ref[...]                      # bf16 (H, 4H), reused across all steps
    b = b_ref[...]                        # f32  (1, 4H)

    # --- Step-0 gate inputs: small M=B matmul so the recurrence starts
    #     without waiting on the full projection (h0 == 0 => no h@wh needed). ---
    xw0 = jnp.dot(x_ref[:B, :].astype(jnp.bfloat16), wx,
                  preferred_element_type=jnp.float32) + b

    # --- Hoisted input projection for steps 1..T-1: one M=(T-1)*B matmul,
    #     off the serial h-chain. ---
    xw_ref[...] = jnp.dot(x_ref[B:, :].astype(jnp.bfloat16), wx,
                          preferred_element_type=jnp.float32) + b

    # --- Recurrence: fully unrolled (T is static); h/c live as f32 vreg values. ---
    h = jnp.zeros((B, H), jnp.float32)
    c = jnp.zeros((B, H), jnp.float32)
    for t in range(T):
        if t == 0:
            gates = xw0                                    # h0 == 0: skip h @ wh
        else:
            gates = xw_ref[(t - 1) * B:t * B, :] + jnp.dot(
                h.astype(jnp.bfloat16), wh,
                preferred_element_type=jnp.float32)        # (B, 4H)
        sig = jax.nn.sigmoid(gates[:, :3 * H])             # i | f | o in one EUP slab
        g = jnp.tanh(gates[:, 3 * H:])                     # cell gate
        i_g = sig[:, 0:H]
        f_g = sig[:, H:2 * H]
        o_g = sig[:, 2 * H:3 * H]
        c = c * f_g + i_g * g
        h = o_g * jnp.tanh(c)

    # --- Final FC on the last hidden state (lane-dense padded output). ---
    out_ref[...] = (
        jnp.dot(h, wf_ref[...], preferred_element_type=jnp.float32)
        + bf_ref[...]
    ).astype(out_ref.dtype)


def prepare_lstm_params(wx, bx, wh, bh, wf, bf):
    """One-time parameter preparation (do NOT call per forward).

    Permutes gate columns (i, f, g, o) -> (i, f, o, g), merges the biases,
    casts the matmul weights to bf16, and lane-pads the FC to 128 columns.
    """
    H = wh.shape[0]
    O = wf.shape[1]

    def perm(w):
        return jnp.concatenate(
            [w[..., :2 * H], w[..., 3 * H:4 * H], w[..., 2 * H:3 * H]], axis=-1)

    wx_p = perm(wx).astype(jnp.bfloat16)
    wh_p = perm(wh).astype(jnp.bfloat16)
    b_p = perm(bx + bh).reshape(1, 4 * H).astype(jnp.float32)
    wf_p = jnp.zeros((H, OUT_PAD), jnp.float32).at[:, :O].set(wf)
    bf_p = jnp.zeros((1, OUT_PAD), jnp.float32).at[:, :O].set(bf)
    return wx_p, wh_p, b_p, wf_p, bf_p


@partial(jax.jit, static_argnames=("out_dim",))
def lstm_model_forward(x, wx_p, wh_p, b_p, wf_p, bf_p, *, out_dim=OUTPUT_DIM):
    """x: (B, T, D) f32; remaining args from prepare_lstm_params.

    Returns (B, out_dim) f32, matching LSTMModel.forward (fc on last h).
    """
    B, T, D = x.shape
    H = wh_p.shape[0]

    # Time-major flat input (T*B, D): per-step slabs are contiguous 8-row blocks.
    x_tm = jnp.transpose(x, (1, 0, 2)).reshape(T * B, D)

    # VMEM guard (v7x has 64 MiB / 32 MiB scoped): xw scratch grows ~2 KiB per
    # (time*batch) row; tile the batch with a grid axis before scaling it up.
    assert (T - 1) * B * 4 * H * 4 <= 8 * (1 << 20), (
        "xw scratch too large for a single block; add a batch grid axis.")

    full = lambda shape: pl.BlockSpec(shape, lambda: tuple(0 for _ in shape))

    out_padded = pl.pallas_call(
        lstm_fc_kernel,
        out_shape=jax.ShapeDtypeStruct((B, OUT_PAD), jnp.float32),
        grid_spec=pltpu.PrefetchScalarGridSpec(
            num_scalar_prefetch=0,
            grid=(),                               # whole problem in one block
            in_specs=[
                full((T * B, D)),
                full((D, 4 * H)),
                full((H, 4 * H)),
                full((1, 4 * H)),
                full((H, OUT_PAD)),
                full((1, OUT_PAD)),
            ],
            out_specs=full((B, OUT_PAD)),
            scratch_shapes=[pltpu.VMEM(((T - 1) * B, 4 * H), jnp.float32)],
        ),
    )(x_tm, wx_p, wh_p, b_p, wf_p, bf_p)

    return out_padded[:, :out_dim]


def reference_forward(x, wx, bx, wh, bh, wf, bf):
    """Pure-JAX f32 reference mirroring the PyTorch module (gate order i, f, g, o)."""
    B, T, D = x.shape
    H = wh.shape[0]
    h = jnp.zeros((B, H), jnp.float32)
    c = jnp.zeros((B, H), jnp.float32)
    for t in range(T):
        gates = x[:, t, :] @ wx + bx + h @ wh + bh
        i = jax.nn.sigmoid(gates[:, 0 * H:1 * H])
        f = jax.nn.sigmoid(gates[:, 1 * H:2 * H])
        g = jnp.tanh(gates[:, 2 * H:3 * H])
        o = jax.nn.sigmoid(gates[:, 3 * H:4 * H])
        c = c * f + i * g
        h = o * jnp.tanh(c)
    return h @ wf + bf


def reference_forward_bf16(x, wx, bx, wh, bh, wf, bf):
    """Reference mirroring the kernel's numerics: bf16 matmul inputs, f32 acc."""
    B, T, D = x.shape
    H = wh.shape[0]
    bf16 = jnp.bfloat16
    wx_b, wh_b = wx.astype(bf16), wh.astype(bf16)
    b = (bx + bh).astype(jnp.float32)
    h = jnp.zeros((B, H), jnp.float32)
    c = jnp.zeros((B, H), jnp.float32)
    for t in range(T):
        gates = (jnp.dot(x[:, t, :].astype(bf16), wx_b,
                         preferred_element_type=jnp.float32) + b
                 + jnp.dot(h.astype(bf16), wh_b,
                           preferred_element_type=jnp.float32))
        i = jax.nn.sigmoid(gates[:, 0 * H:1 * H])
        f = jax.nn.sigmoid(gates[:, 1 * H:2 * H])
        g = jnp.tanh(gates[:, 2 * H:3 * H])
        o = jax.nn.sigmoid(gates[:, 3 * H:4 * H])
        c = c * f + i * g
        h = o * jnp.tanh(c)
    return jnp.dot(h, wf, preferred_element_type=jnp.float32) + bf


if __name__ == "__main__":
    B, T, D, H, O = 8, 8, INPUT_DIM, HIDDEN_DIM, OUTPUT_DIM

    key = jax.random.PRNGKey(0)
    kx, kwx, kbx, kwh, kbh, kwf, kbf = jax.random.split(key, 7)

    std = 1.0 / math.sqrt(H)          # PyTorch reset_parameters: U(-std, std)
    x = jax.random.normal(kx, (B, T, D), jnp.float32)
    # Weights stored in "x @ W" layout: (in_features, out_features).
    wx = jax.random.uniform(kwx, (D, 4 * H), jnp.float32, -std, std)
    bx = jax.random.uniform(kbx, (4 * H,), jnp.float32, -std, std)
    wh = jax.random.uniform(kwh, (H, 4 * H), jnp.float32, -std, std)
    bh = jax.random.uniform(kbh, (4 * H,), jnp.float32, -std, std)
    std_fc = 1.0 / math.sqrt(H)       # nn.Linear default init bound
    wf = jax.random.uniform(kwf, (H, O), jnp.float32, -std_fc, std_fc)
    bf = jax.random.uniform(kbf, (O,), jnp.float32, -std_fc, std_fc)

    # One-time weight prep (permute / merge / pad / bf16-cast), outside the forward.
    params = prepare_lstm_params(wx, bx, wh, bh, wf, bf)

    out = lstm_model_forward(x, *params, out_dim=O)
    out = jax.block_until_ready(out)
    assert out.shape == (B, O)

    # Tight check vs. a reference with identical bf16-input / f32-accum numerics.
    ref_bf16 = reference_forward_bf16(x, wx, bx, wh, bh, wf, bf)
    assert jnp.allclose(out, ref_bf16, atol=1e-3, rtol=1e-3), "mismatch vs bf16 reference"

    # Loose check vs. the pure-f32 PyTorch-equivalent reference (bf16 weight
    # truncation on the MXU inputs bounds the gap well under this tolerance).
    ref = reference_forward(x, wx, bx, wh, bh, wf, bf)
    assert jnp.allclose(out, ref, atol=2e-2, rtol=2e-2), "mismatch vs f32 reference"

    print("KERNEL_OK")
</pallas_src>

<mosaic_0001>
module attributes {stable_mosaic.version = 11 : i64} {
  func.func @lstm_fc_kernel(%arg0: memref<64x28xf32, #tpu.memory_space<vmem>>, %arg1: memref<28x512xbf16, #tpu.memory_space<vmem>>, %arg2: memref<128x512xbf16, #tpu.memory_space<vmem>>, %arg3: memref<1x512xf32, #tpu.memory_space<vmem>>, %arg4: memref<128x128xf32, #tpu.memory_space<vmem>>, %arg5: memref<1x128xf32, #tpu.memory_space<vmem>>, %arg6: memref<8x128xf32, #tpu.memory_space<vmem>>, %arg7: memref<56x512xf32, #tpu.memory_space<vmem>>) attributes {dimension_semantics = [], scalar_prefetch = 0 : i64, scratch_operands = 1 : i64, tpu.core_type = #tpu.core_type<tc>} {
    %c0 = arith.constant 0 : index
    %c0_0 = arith.constant 0 : index
    %0 = vector.load %arg1[%c0, %c0_0] : memref<28x512xbf16, #tpu.memory_space<vmem>>, vector<28x512xbf16>
    %c0_1 = arith.constant 0 : index
    %c0_2 = arith.constant 0 : index
    %1 = vector.load %arg2[%c0_1, %c0_2] : memref<128x512xbf16, #tpu.memory_space<vmem>>, vector<128x512xbf16>
    %c0_3 = arith.constant 0 : index
    %c0_4 = arith.constant 0 : index
    %2 = vector.load %arg3[%c0_3, %c0_4] : memref<1x512xf32, #tpu.memory_space<vmem>>, vector<1x512xf32>
    %c0_5 = arith.constant 0 : index
    %c0_6 = arith.constant 0 : index
    %3 = vector.load %arg0[%c0_5, %c0_6] : memref<64x28xf32, #tpu.memory_space<vmem>>, vector<8x28xf32>
    %4 = arith.truncf %3 : vector<8x28xf32> to vector<8x28xbf16>
    %cst = arith.constant dense<0.000000e+00> : vector<8x512xf32>
    %5 = tpu.matmul %4, %0, %cst {dimension_numbers = #tpu.dot_dimension_numbers<[1], [0], [0], [1], [0, 0, 1, 1], [], []>} : vector<8x28xbf16>, vector<28x512xbf16>, vector<8x512xf32> -> vector<8x512xf32>
    %6 = vector.broadcast %2 : vector<1x512xf32> to vector<8x512xf32>
    %7 = arith.addf %5, %6 : vector<8x512xf32>
    %c8 = arith.constant 8 : index
    %c0_7 = arith.constant 0 : index
    %8 = vector.load %arg0[%c8, %c0_7] : memref<64x28xf32, #tpu.memory_space<vmem>>, vector<56x28xf32>
    %9 = arith.truncf %8 : vector<56x28xf32> to vector<56x28xbf16>
    %cst_8 = arith.constant dense<0.000000e+00> : vector<56x512xf32>
    %10 = tpu.matmul %9, %0, %cst_8 {dimension_numbers = #tpu.dot_dimension_numbers<[1], [0], [0], [1], [0, 0, 1, 1], [], []>} : vector<56x28xbf16>, vector<28x512xbf16>, vector<56x512xf32> -> vector<56x512xf32>
    %11 = vector.broadcast %2 : vector<1x512xf32> to vector<56x512xf32>
    %12 = arith.addf %10, %11 : vector<56x512xf32>
    %c0_9 = arith.constant 0 : index
    %c0_10 = arith.constant 0 : index
    %13 = vector.load %arg7[%c0_9, %c0_10] : memref<56x512xf32, #tpu.memory_space<vmem>>, vector<56x512xf32>
    tpu.vector_store %arg7[%c0_9, %c0_10], %12 {strides = array<i32>} : memref<56x512xf32, #tpu.memory_space<vmem>>, vector<56x512xf32>,
    %cst_11 = arith.constant 0.000000e+00 : f32
    %14 = vector.broadcast %cst_11 : f32 to vector<8x128xf32>
    %15 = vector.extract_strided_slice %7 {offsets = [0, 0], sizes = [8, 384], strides = [1, 1]} : vector<8x512xf32> to vector<8x384xf32>
    %16 = arith.negf %15 : vector<8x384xf32>
    %17 = math.exp %16 : vector<8x384xf32>
    %cst_12 = arith.constant 1.000000e+00 : f32
    %18 = vector.broadcast %cst_12 : f32 to vector<8x384xf32>
    %19 = arith.addf %18, %17 : vector<8x384xf32>
    %20 = arith.divf %18, %19 : vector<8x384xf32>
    %21 = vector.extract_strided_slice %7 {offsets = [0, 384], sizes = [8, 128], strides = [1, 1]} : vector<8x512xf32> to vector<8x128xf32>
    %22 = math.tanh %21 : vector<8x128xf32>
    %23 = vector.extract_strided_slice %20 {offsets = [0, 0], sizes = [8, 128], strides = [1, 1]} : vector<8x384xf32> to vector<8x128xf32>
    %24 = vector.extract_strided_slice %20 {offsets = [0, 128], sizes = [8, 128], strides = [1, 1]} : vector<8x384xf32> to vector<8x128xf32>
    %25 = vector.extract_strided_slice %20 {offsets = [0, 256], sizes = [8, 128], strides = [1, 1]} : vector<8x384xf32> to vector<8x128xf32>
    %26 = arith.mulf %14, %24 : vector<8x128xf32>
    %27 = arith.mulf %23, %22 : vector<8x128xf32>
    %28 = arith.addf %26, %27 : vector<8x128xf32>
    %29 = math.tanh %28 : vector<8x128xf32>
    %30 = arith.mulf %25, %29 : vector<8x128xf32>
    %c0_13 = arith.constant 0 : index
    %c0_14 = arith.constant 0 : index
    %31 = vector.load %arg7[%c0_13, %c0_14] : memref<56x512xf32, #tpu.memory_space<vmem>>, vector<8x512xf32>
    %32 = arith.truncf %30 : vector<8x128xf32> to vector<8x128xbf16>
    %cst_15 = arith.constant dense<0.000000e+00> : vector<8x512xf32>
    %33 = tpu.matmul %32, %1, %cst_15 {dimension_numbers = #tpu.dot_dimension_numbers<[1], [0], [0], [1], [0, 0, 1, 1], [], []>} : vector<8x128xbf16>, vector<128x512xbf16>, vector<8x512xf32> -> vector<8x512xf32>
    %34 = arith.addf %31, %33 : vector<8x512xf32>
    %35 = vector.extract_strided_slice %34 {offsets = [0, 0], sizes = [8, 384], strides = [1, 1]} : vector<8x512xf32> to vector<8x384xf32>
    %36 = arith.negf %35 : vector<8x384xf32>
    %37 = math.exp %36 : vector<8x384xf32>
    %cst_16 = arith.constant 1.000000e+00 : f32
    %38 = vector.broadcast %cst_16 : f32 to vector<8x384xf32>
    %39 = arith.addf %38, %37 : vector<8x384xf32>
    %40 = arith.divf %38, %39 : vector<8x384xf32>
    %41 = vector.extract_strided_slice %34 {offsets = [0, 384], sizes = [8, 128], strides = [1, 1]} : vector<8x512xf32> to vector<8x128xf32>
    %42 = math.tanh %41 : vector<8x128xf32>
    %43 = vector.extract_strided_slice %40 {offsets = [0, 0], sizes = [8, 128], strides = [1, 1]} : vector<8x384xf32> to vector<8x128xf32>
    %44 = vector.extract_strided_slice %40 {offsets = [0, 128], sizes = [8, 128], strides = [1, 1]} : vector<8x384xf32> to vector<8x128xf32>
    %45 = vector.extract_strided_slice %40 {offsets = [0, 256], sizes = [8, 128], strides = [1, 1]} : vector<8x384xf32> to vector<8x128xf32>
    %46 = arith.mulf %28, %44 : vector<8x128xf32>
    %47 = arith.mulf %43, %42 : vector<8x128xf32>
    %48 = arith.addf %46, %47 : vector<8x128xf32>
    %49 = math.tanh %48 : vector<8x128xf32>
    %50 = arith.mulf %45, %49 : vector<8x128xf32>
    %c8_17 = arith.constant 8 : index
    %c0_18 = arith.constant 0 : index
    %51 = vector.load %arg7[%c8_17, %c0_18] : memref<56x512xf32, #tpu.memory_space<vmem>>, vector<8x512xf32>
    %52 = arith.truncf %50 : vector<8x128xf32> to vector<8x128xbf16>
    %cst_19 = arith.constant dense<0.000000e+00> : vector<8x512xf32>
    %53 = tpu.matmul %52, %1, %cst_19 {dimension_numbers = #tpu.dot_dimension_numbers<[1], [0], [0], [1], [0, 0, 1, 1], [], []>} : vector<8x128xbf16>, vector<128x512xbf16>, vector<8x512xf32> -> vector<8x512xf32>
    %54 = arith.addf %51, %53 : vector<8x512xf32>
    %55 = vector.extract_strided_slice %54 {offsets = [0, 0], sizes = [8, 384], strides = [1, 1]} : vector<8x512xf32> to vector<8x384xf32>
    %56 = arith.negf %55 : vector<8x384xf32>
    %57 = math.exp %56 : vector<8x384xf32>
    %cst_20 = arith.constant 1.000000e+00 : f32
    %58 = vector.broadcast %cst_20 : f32 to vector<8x384xf32>
    %59 = arith.addf %58, %57 : vector<8x384xf32>
    %60 = arith.divf %58, %59 : vector<8x384xf32>
    %61 = vector.extract_strided_slice %54 {offsets = [0, 384], sizes = [8, 128], strides = [1, 1]} : vector<8x512xf32> to vector<8x128xf32>
    %62 = math.tanh %61 : vector<8x128xf32>
    %63 = vector.extract_strided_slice %60 {offsets = [0, 0], sizes = [8, 128], strides = [1, 1]} : vector<8x384xf32> to vector<8x128xf32>
    %64 = vector.extract_strided_slice %60 {offsets = [0, 128], sizes = [8, 128], strides = [1, 1]} : vector<8x384xf32> to vector<8x128xf32>
    %65 = vector.extract_strided_slice %60 {offsets = [0, 256], sizes = [8, 128], strides = [1, 1]} : vector<8x384xf32> to vector<8x128xf32>
    %66 = arith.mulf %48, %64 : vector<8x128xf32>
    %67 = arith.mulf %63, %62 : vector<8x128xf32>
    %68 = arith.addf %66, %67 : vector<8x128xf32>
    %69 = math.tanh %68 : vector<8x128xf32>
    %70 = arith.mulf %65, %69 : vector<8x128xf32>
    %c16 = arith.constant 16 : index
    %c0_21 = arith.constant 0 : index
    %71 = vector.load %arg7[%c16, %c0_21] : memref<56x512xf32, #tpu.memory_space<vmem>>, vector<8x512xf32>
    %72 = arith.truncf %70 : vector<8x128xf32> to vector<8x128xbf16>
    %cst_22 = arith.constant dense<0.000000e+00> : vector<8x512xf32>
    %73 = tpu.matmul %72, %1, %cst_22 {dimension_numbers = #tpu.dot_dimension_numbers<[1], [0], [0], [1], [0, 0, 1, 1], [], []>} : vector<8x128xbf16>, vector<128x512xbf16>, vector<8x512xf32> -> vector<8x512xf32>
    %74 = arith.addf %71, %73 : vector<8x512xf32>
    %75 = vector.extract_strided_slice %74 {offsets = [0, 0], sizes = [8, 384], strides = [1, 1]} : vector<8x512xf32> to vector<8x384xf32>
    %76 = arith.negf %75 : vector<8x384xf32>
    %77 = math.exp %76 : vector<8x384xf32>
    %cst_23 = arith.constant 1.000000e+00 : f32
    %78 = vector.broadcast %cst_23 : f32 to vector<8x384xf32>
    %79 = arith.addf %78, %77 : vector<8x384xf32>
    %80 = arith.divf %78, %79 : vector<8x384xf32>
    %81 = vector.extract_strided_slice %74 {offsets = [0, 384], sizes = [8, 128], strides = [1, 1]} : vector<8x512xf32> to vector<8x128xf32>
    %82 = math.tanh %81 : vector<8x128xf32>
    %83 = vector.extract_strided_slice %80 {offsets = [0, 0], sizes = [8, 128], strides = [1, 1]} : vector<8x384xf32> to vector<8x128xf32>
    %84 = vector.extract_strided_slice %80 {offsets = [0, 128], sizes = [8, 128], strides = [1, 1]} : vector<8x384xf32> to vector<8x128xf32>
    %85 = vector.extract_strided_slice %80 {offsets = [0, 256], sizes = [8, 128], strides = [1, 1]} : vector<8x384xf32> to vector<8x128xf32>
    %86 = arith.mulf %68, %84 : vector<8x128xf32>
    %87 = arith.mulf %83, %82 : vector<8x128xf32>
    %88 = arith.addf %86, %87 : vector<8x128xf32>
    %89 = math.tanh %88 : vector<8x128xf32>
    %90 = arith.mulf %85, %89 : vector<8x128xf32>
    %c24 = arith.constant 24 : index
    %c0_24 = arith.constant 0 : index
    %91 = vector.load %arg7[%c24, %c0_24] : memref<56x512xf32, #tpu.memory_space<vmem>>, vector<8x512xf32>
    %92 = arith.truncf %90 : vector<8x128xf32> to vector<8x128xbf16>
    %cst_25 = arith.constant dense<0.000000e+00> : vector<8x512xf32>
    %93 = tpu.matmul %92, %1, %cst_25 {dimension_numbers = #tpu.dot_dimension_numbers<[1], [0], [0], [1], [0, 0, 1, 1], [], []>} : vector<8x128xbf16>, vector<128x512xbf16>, vector<8x512xf32> -> vector<8x512xf32>
    %94 = arith.addf %91, %93 : vector<8x512xf32>
    %95 = vector.extract_strided_slice %94 {offsets = [0, 0], sizes = [8, 384], strides = [1, 1]} : vector<8x512xf32> to vector<8x384xf32>
    %96 = arith.negf %95 : vector<8x384xf32>
    %97 = math.exp %96 : vector<8x384xf32>
    %cst_26 = arith.constant 1.000000e+00 : f32
    %98 = vector.broadcast %cst_26 : f32 to vector<8x384xf32>
    %99 = arith.addf %98, %97 : vector<8x384xf32>
    %100 = arith.divf %98, %99 : vector<8x384xf32>
    %101 = vector.extract_strided_slice %94 {offsets = [0, 384], sizes = [8, 128], strides = [1, 1]} : vector<8x512xf32> to vector<8x128xf32>
    %102 = math.tanh %101 : vector<8x128xf32>
    %103 = vector.extract_strided_slice %100 {offsets = [0, 0], sizes = [8, 128], strides = [1, 1]} : vector<8x384xf32> to vector<8x128xf32>
    %104 = vector.extract_strided_slice %100 {offsets = [0, 128], sizes = [8, 128], strides = [1, 1]} : vector<8x384xf32> to vector<8x128xf32>
    %105 = vector.extract_strided_slice %100 {offsets = [0, 256], sizes = [8, 128], strides = [1, 1]} : vector<8x384xf32> to vector<8x128xf32>
    %106 = arith.mulf %88, %104 : vector<8x128xf32>
    %107 = arith.mulf %103, %102 : vector<8x128xf32>
    %108 = arith.addf %106, %107 : vector<8x128xf32>
    %109 = math.tanh %108 : vector<8x128xf32>
    %110 = arith.mulf %105, %109 : vector<8x128xf32>
    %c32 = arith.constant 32 : index
    %c0_27 = arith.constant 0 : index
    %111 = vector.load %arg7[%c32, %c0_27] : memref<56x512xf32, #tpu.memory_space<vmem>>, vector<8x512xf32>
    %112 = arith.truncf %110 : vector<8x128xf32> to vector<8x128xbf16>
    %cst_28 = arith.constant dense<0.000000e+00> : vector<8x512xf32>
    %113 = tpu.matmul %112, %1, %cst_28 {dimension_numbers = #tpu.dot_dimension_numbers<[1], [0], [0], [1], [0, 0, 1, 1], [], []>} : vector<8x128xbf16>, vector<128x512xbf16>, vector<8x512xf32> -> vector<8x512xf32>
    %114 = arith.addf %111, %113 : vector<8x512xf32>
    %115 = vector.extract_strided_slice %114 {offsets = [0, 0], sizes = [8, 384], strides = [1, 1]} : vector<8x512xf32> to vector<8x384xf32>
    %116 = arith.negf %115 : vector<8x384xf32>
    %117 = math.exp %116 : vector<8x384xf32>
    %cst_29 = arith.constant 1.000000e+00 : f32
    %118 = vector.broadcast %cst_29 : f32 to vector<8x384xf32>
    %119 = arith.addf %118, %117 : vector<8x384xf32>
    %120 = arith.divf %118, %119 : vector<8x384xf32>
    %121 = vector.extract_strided_slice %114 {offsets = [0, 384], sizes = [8, 128], strides = [1, 1]} : vector<8x512xf32> to vector<8x128xf32>
    %122 = math.tanh %121 : vector<8x128xf32>
    %123 = vector.extract_strided_slice %120 {offsets = [0, 0], sizes = [8, 128], strides = [1, 1]} : vector<8x384xf32> to vector<8x128xf32>
    %124 = vector.extract_strided_slice %120 {offsets = [0, 128], sizes = [8, 128], strides = [1, 1]} : vector<8x384xf32> to vector<8x128xf32>
    %125 = vector.extract_strided_slice %120 {offsets = [0, 256], sizes = [8, 128], strides = [1, 1]} : vector<8x384xf32> to vector<8x128xf32>
    %126 = arith.mulf %108, %124 : vector<8x128xf32>
    %127 = arith.mulf %123, %122 : vector<8x128xf32>
    %128 = arith.addf %126, %127 : vector<8x128xf32>
    %129 = math.tanh %128 : vector<8x128xf32>
    %130 = arith.mulf %125, %129 : vector<8x128xf32>
    %c40 = arith.constant 40 : index
    %c0_30 = arith.constant 0 : index
    %131 = vector.load %arg7[%c40, %c0_30] : memref<56x512xf32, #tpu.memory_space<vmem>>, vector<8x512xf32>
    %132 = arith.truncf %130 : vector<8x128xf32> to vector<8x128xbf16>
    %cst_31 = arith.constant dense<0.000000e+00> : vector<8x512xf32>
    %133 = tpu.matmul %132, %1, %cst_31 {dimension_numbers = #tpu.dot_dimension_numbers<[1], [0], [0], [1], [0, 0, 1, 1], [], []>} : vector<8x128xbf16>, vector<128x512xbf16>, vector<8x512xf32> -> vector<8x512xf32>
    %134 = arith.addf %131, %133 : vector<8x512xf32>
    %135 = vector.extract_strided_slice %134 {offsets = [0, 0], sizes = [8, 384], strides = [1, 1]} : vector<8x512xf32> to vector<8x384xf32>
    %136 = arith.negf %135 : vector<8x384xf32>
    %137 = math.exp %136 : vector<8x384xf32>
    %cst_32 = arith.constant 1.000000e+00 : f32
    %138 = vector.broadcast %cst_32 : f32 to vector<8x384xf32>
    %139 = arith.addf %138, %137 : vector<8x384xf32>
    %140 = arith.divf %138, %139 : vector<8x384xf32>
    %141 = vector.extract_strided_slice %134 {offsets = [0, 384], sizes = [8, 128], strides = [1, 1]} : vector<8x512xf32> to vector<8x128xf32>
    %142 = math.tanh %141 : vector<8x128xf32>
    %143 = vector.extract_strided_slice %140 {offsets = [0, 0], sizes = [8, 128], strides = [1, 1]} : vector<8x384xf32> to vector<8x128xf32>
    %144 = vector.extract_strided_slice %140 {offsets = [0, 128], sizes = [8, 128], strides = [1, 1]} : vector<8x384xf32> to vector<8x128xf32>
    %145 = vector.extract_strided_slice %140 {offsets = [0, 256], sizes = [8, 128], strides = [1, 1]} : vector<8x384xf32> to vector<8x128xf32>
    %146 = arith.mulf %128, %144 : vector<8x128xf32>
    %147 = arith.mulf %143, %142 : vector<8x128xf32>
    %148 = arith.addf %146, %147 : vector<8x128xf32>
    %149 = math.tanh %148 : vector<8x128xf32>
    %150 = arith.mulf %145, %149 : vector<8x128xf32>
    %c48 = arith.constant 48 : index
    %c0_33 = arith.constant 0 : index
    %151 = vector.load %arg7[%c48, %c0_33] : memref<56x512xf32, #tpu.memory_space<vmem>>, vector<8x512xf32>
    %152 = arith.truncf %150 : vector<8x128xf32> to vector<8x128xbf16>
    %cst_34 = arith.constant dense<0.000000e+00> : vector<8x512xf32>
    %153 = tpu.matmul %152, %1, %cst_34 {dimension_numbers = #tpu.dot_dimension_numbers<[1], [0], [0], [1], [0, 0, 1, 1], [], []>} : vector<8x128xbf16>, vector<128x512xbf16>, vector<8x512xf32> -> vector<8x512xf32>
    %154 = arith.addf %151, %153 : vector<8x512xf32>
    %155 = vector.extract_strided_slice %154 {offsets = [0, 0], sizes = [8, 384], strides = [1, 1]} : vector<8x512xf32> to vector<8x384xf32>
    %156 = arith.negf %155 : vector<8x384xf32>
    %157 = math.exp %156 : vector<8x384xf32>
    %cst_35 = arith.constant 1.000000e+00 : f32
    %158 = vector.broadcast %cst_35 : f32 to vector<8x384xf32>
    %159 = arith.addf %158, %157 : vector<8x384xf32>
    %160 = arith.divf %158, %159 : vector<8x384xf32>
    %161 = vector.extract_strided_slice %154 {offsets = [0, 384], sizes = [8, 128], strides = [1, 1]} : vector<8x512xf32> to vector<8x128xf32>
    %162 = math.tanh %161 : vector<8x128xf32>
    %163 = vector.extract_strided_slice %160 {offsets = [0, 0], sizes = [8, 128], strides = [1, 1]} : vector<8x384xf32> to vector<8x128xf32>
    %164 = vector.extract_strided_slice %160 {offsets = [0, 128], sizes = [8, 128], strides = [1, 1]} : vector<8x384xf32> to vector<8x128xf32>
    %165 = vector.extract_strided_slice %160 {offsets = [0, 256], sizes = [8, 128], strides = [1, 1]} : vector<8x384xf32> to vector<8x128xf32>
    %166 = arith.mulf %148, %164 : vector<8x128xf32>
    %167 = arith.mulf %163, %162 : vector<8x128xf32>
    %168 = arith.addf %166, %167 : vector<8x128xf32>
    %169 = math.tanh %168 : vector<8x128xf32>
    %170 = arith.mulf %165, %169 : vector<8x128xf32>
    %c0_36 = arith.constant 0 : index
    %c0_37 = arith.constant 0 : index
    %171 = vector.load %arg4[%c0_36, %c0_37] : memref<128x128xf32, #tpu.memory_space<vmem>>, vector<128x128xf32>
    %cst_38 = arith.constant dense<0.000000e+00> : vector<8x128xf32>
    %172 = tpu.matmul %170, %171, %cst_38 {dimension_numbers = #tpu.dot_dimension_numbers<[1], [0], [0], [1], [0, 0, 1, 1], [], []>} : vector<8x128xf32>, vector<128x128xf32>, vector<8x128xf32> -> vector<8x128xf32>
    %c0_39 = arith.constant 0 : index
    %c0_40 = arith.constant 0 : index
    %173 = vector.load %arg5[%c0_39, %c0_40] : memref<1x128xf32, #tpu.memory_space<vmem>>, vector<1x128xf32>
    %174 = vector.broadcast %173 : vector<1x128xf32> to vector<8x128xf32>
    %175 = arith.addf %172, %174 : vector<8x128xf32>
    %c0_41 = arith.constant 0 : index
    %c0_42 = arith.constant 0 : index
    %176 = vector.load %arg6[%c0_41, %c0_42] : memref<8x128xf32, #tpu.memory_space<vmem>>, vector<8x128xf32>
    tpu.vector_store %arg6[%c0_41, %c0_42], %175 {strides = array<i32>} : memref<8x128xf32, #tpu.memory_space<vmem>>, vector<8x128xf32>,
    return
  }
}

</mosaic_0001>

<llo_original>
// kernel: lstm_model_forward.1
$region0: #{lstm_model_forward.1}
  #allocation0 [shape = 'u32[]', space=smem, size = 0x4, offset = 0x4, fixed_abs, tag = 'smem constant byte address 0x4 - core index']
  #allocation1 [shape = 'u32[72,128]{1,0:T(1,128)}', space=vmem, size = 0x9000, scoped, tag = 'internal scratch']
  #allocation2 [shape = 'f32[56,512]{1,0:T(8,128)}', space=vmem, size = 0x1c000, scoped, tag = 'scratch operand']
  %s0 = inlined_call_operand.vmem [shape: f32[64,28], index: 0, kind: input, shape index: {}]
  %s1 = inlined_call_operand.hbm [shape: bf16[28,512], index: 1, kind: input, shape index: {}]
  %s2 = inlined_call_operand.hbm [shape: bf16[128,512], index: 2, kind: input, shape index: {}]
  %s3 = inlined_call_operand.vmem [shape: f32[1,512], index: 3, kind: input, shape index: {}]
  %s4 = inlined_call_operand.vmem [shape: f32[128,128], index: 4, kind: input, shape index: {}]
  %s5 = inlined_call_operand.vmem [shape: f32[1,128], index: 5, kind: input, shape index: {}]
  %s6 = inlined_call_operand.hbm [shape: f32[8,128], index: 6, kind: output, shape index: {}]
  %s7 = sld [smem:[#allocation0]]
  $region42: #{lstm_model_forward.1} parent=0
    _
  %s9 = ssub.s32 1, %s7
  %s10 = scalar_select 0, %s9, %s7
  $region1: #{lstm_model_forward.1} parent=0
    #allocation3 [shape = 'u8[32768]{0}', space=vmem, size = 0x8000, scoped, tag = 'input window, operand 1, single buffered']
    #allocation4 [shape = 's32[1]{0}', space=sflag, size = 0x4, scoped, tag = 'scoped memory for lstm_model_forward.1']
    #allocation5 [shape = 's32[1]{0}', space=sflag, size = 0x4, scoped, tag = 'scoped memory for lstm_model_forward.1']
    #allocation6 [shape = 'u8[131072]{0}', space=vmem, size = 0x20000, scoped, tag = 'input window, operand 2, single buffered']
    #allocation7 [shape = 's32[1]{0}', space=sflag, size = 0x4, scoped, tag = 'scoped memory for lstm_model_forward.1']
    #allocation8 [shape = 'u8[4096]{0}', space=vmem, size = 0x1000, scoped, tag = 'output window, operand 0, single buffered']
    %11 = vsyncpa [#allocation4], 0
    %12 = vsyncpa [#allocation7], 0
    %13 = vsyncpa [#allocation5], 0
    // Predicated region
    $region2: #{lstm_model_forward.1} parent=1 // pred_check
      _
    $region3: #{lstm_model_forward.1} parent=1 // pred_check_branch
      %15 = sbr.rel (0) target = $region5
    $region4: #{lstm_model_forward.1} parent=1 // pred_region
      _
    $region5: #{lstm_model_forward.1} parent=1 // pred_fallthru
      _
    // Predicated region
    $region6: #{lstm_model_forward.1} parent=1 // pred_check
      _
    $region7: #{lstm_model_forward.1} parent=1 // pred_check_branch
      %17 = sbr.rel (0) target = $region9
    $region8: #{lstm_model_forward.1} parent=1 // pred_region
      %19 = vsyncadd [#allocation4], 0
      %s20 = sshll.u32 %s1, 4
      %s21 = int_to_ptr.hbm [resolvable:$true] %s20
      %s22 = sshll.u32 [#allocation3], 4
      %s23 = int_to_ptr.vmem [resolvable:$true] %s22
      %28 = dma.hbm_to_vmem [thread:$0]  %s21, 1024, %s23, [#allocation4], 256, 256, 16
    $region9: #{lstm_model_forward.1} parent=1 // pred_fallthru
      _
    // Predicated region
    $region10: #{lstm_model_forward.1} parent=1 // pred_check
      _
    $region11: #{lstm_model_forward.1} parent=1 // pred_check_branch
      %30 = sbr.rel (0) target = $region13
    $region12: #{lstm_model_forward.1} parent=1 // pred_region
      %32 = vsyncadd [#allocation7], 0
      %s33 = sshll.u32 %s2, 4
      %s34 = int_to_ptr.hbm [resolvable:$true] %s33
      %s35 = sshll.u32 [#allocation6], 4
      %s36 = int_to_ptr.vmem [resolvable:$true] %s35
      %41 = dma.hbm_to_vmem [thread:$0]  %s34, 4096, %s36, [#allocation7], 256, 256, 16
    $region13: #{lstm_model_forward.1} parent=1 // pred_fallthru
      _
    // Predicated region
    $region14: #{lstm_model_forward.1} parent=1 // pred_check
      _
    $region15: #{lstm_model_forward.1} parent=1 // pred_check_branch
      %43 = sbr.rel (0) target = $region17
    $region16: #{lstm_model_forward.1} parent=1 // pred_region
      _
    $region17: #{lstm_model_forward.1} parent=1 // pred_fallthru
      _
    // Predicated region
    $region18: #{lstm_model_forward.1} parent=1 // pred_check
      _
    $region19: #{lstm_model_forward.1} parent=1 // pred_check_branch
      %45 = sbr.rel (0) target = $region21
    $region20: #{lstm_model_forward.1} parent=1 // pred_region
      _
    $region21: #{lstm_model_forward.1} parent=1 // pred_fallthru
      _
    // Predicated region
    $region22: #{lstm_model_forward.1} parent=1 // pred_check
      _
    $region23: #{lstm_model_forward.1} parent=1 // pred_check_branch
      %47 = sbr.rel (0) target = $region25
    $region24: #{lstm_model_forward.1} parent=1 // pred_region
      _
    $region25: #{lstm_model_forward.1} parent=1 // pred_fallthru
      _
    // Predicated region
    $region26: #{lstm_model_forward.1} parent=1 // pred_check
      _
    $region27: #{lstm_model_forward.1} parent=1 // pred_check_branch
      %49 = sbr.rel (0) target = $region29
    $region28: #{lstm_model_forward.1} parent=1 // pred_region
      %51 = dma.done [#allocation4], 1024
    $region29: #{lstm_model_forward.1} parent=1 // pred_fallthru
      _
    // Predicated region
    $region30: #{lstm_model_forward.1} parent=1 // pred_check
      _
    $region31: #{lstm_model_forward.1} parent=1 // pred_check_branch
      %53 = sbr.rel (0) target = $region33
    $region32: #{lstm_model_forward.1} parent=1 // pred_region
      %55 = dma.done [#allocation7], 4096
    $region33: #{lstm_model_forward.1} parent=1 // pred_fallthru
      _
    %v57 = vld [vmem:[#allocation3] sm:$0xff]
    %v58 = vld [vmem:[#allocation3 + $0x8] sm:$0xff]
    %v59 = vld [vmem:[#allocation3 + $0x10] sm:$0xff]
    %v60 = vld [vmem:[#allocation3 + $0x18] sm:$0xff]
    %v61 = vld [vmem:[#allocation3 + $0x20] sm:$0xff]
    %v62 = vld [vmem:[#allocation3 + $0x28] sm:$0xff]
    %v63 = vld [vmem:[#allocation3 + $0x30] sm:$0x33]
    %v64 = vld [vmem:[#allocation3 + $0x38] sm:$0x33]
    %v65 = vld [vmem:[#allocation6] sm:$0xff]
    %v66 = vld [vmem:[#allocation6 + $0x8] sm:$0xff]
    %v67 = vld [vmem:[#allocation6 + $0x10] sm:$0xff]
    %v68 = vld [vmem:[#allocation6 + $0x18] sm:$0xff]
    %v69 = vld [vmem:[#allocation6 + $0x20] sm:$0xff]
    %v70 = vld [vmem:[#allocation6 + $0x28] sm:$0xff]
    %v71 = vld [vmem:[#allocation6 + $0x30] sm:$0xff]
    %v72 = vld [vmem:[#allocation6 + $0x38] sm:$0xff]
    %v73 = vld [vmem:[#allocation6 + $0x40] sm:$0xff]
    %v74 = vld [vmem:[#allocation6 + $0x48] sm:$0xff]
    %v75 = vld [vmem:[#allocation6 + $0x50] sm:$0xff]
    %v76 = vld [vmem:[#allocation6 + $0x58] sm:$0xff]
    %v77 = vld [vmem:[#allocation6 + $0x60] sm:$0xff]
    %v78 = vld [vmem:[#allocation6 + $0x68] sm:$0xff]
    %v79 = vld [vmem:[#allocation6 + $0x70] sm:$0xff]
    %v80 = vld [vmem:[#allocation6 + $0x78] sm:$0xff]
    %v81 = vld [vmem:[#allocation6 + $0x80] sm:$0xff]
    %v82 = vld [vmem:[#allocation6 + $0x88] sm:$0xff]
    %v83 = vld [vmem:[#allocation6 + $0x90] sm:$0xff]
    %v84 = vld [vmem:[#allocation6 + $0x98] sm:$0xff]
    %v85 = vld [vmem:[#allocation6 + $0xa0] sm:$0xff]
    %v86 = vld [vmem:[#allocation6 + $0xa8] sm:$0xff]
    %v87 = vld [vmem:[#allocation6 + $0xb0] sm:$0xff]
    %v88 = vld [vmem:[#allocation6 + $0xb8] sm:$0xff]
    %v89 = vld [vmem:[#allocation6 + $0xc0] sm:$0xff]
    %v90 = vld [vmem:[#allocation6 + $0xc8] sm:$0xff]
    %v91 = vld [vmem:[#allocation6 + $0xd0] sm:$0xff]
    %v92 = vld [vmem:[#allocation6 + $0xd8] sm:$0xff]
    %v93 = vld [vmem:[#allocation6 + $0xe0] sm:$0xff]
    %v94 = vld [vmem:[#allocation6 + $0xe8] sm:$0xff]
    %v95 = vld [vmem:[#allocation6 + $0xf0] sm:$0xff]
    %v96 = vld [vmem:[#allocation6 + $0xf8] sm:$0xff]
    %v97 = vld [vmem:[%s3] sm:$0xf]
    %v98 = vld [vmem:[%s0] sm:$0xff]
    %v99 = vpack.c.bf16 %v98, %v98
    %v101 = vperm.slane %v97, 0
    %v102 = vperm.slane %v97, 1
    %v103 = vperm.slane %v97, 2
    %v104 = vperm.slane %v97, 3
    %v117 = vunpack.c.l.b16 %v57
    %v118 = vunpack.c.h.b16 %v57
    %v119 = vunpack.c.l.b16 %v58
    %v120 = vunpack.c.h.b16 %v58
    %v121 = vunpack.c.l.b16 %v59
    %v122 = vunpack.c.h.b16 %v59
    %v123 = vunpack.c.l.b16 %v60
    %v124 = vunpack.c.h.b16 %v60
    %v125 = vunpack.c.l.b16 %v61
    %v126 = vunpack.c.h.b16 %v61
    %v127 = vunpack.c.l.b16 %v62
    %v128 = vunpack.c.h.b16 %v62
    %v129 = vunpack.c.l.b16 %v63
    %v130 = vunpack.c.h.b16 %v63
    %v131 = vunpack.c.l.b16 %v64
    %v132 = vunpack.c.h.b16 %v64
    %v133 = vpack.c.b16 %v121, %v117
    %v134 = vpack.c.b16 %v122, %v118
    %v135 = vpack.c.b16 %v123, %v119
    %v136 = vpack.c.b16 %v124, %v120
    %v137 = vpack.c.b16 %v129, %v125
    %v138 = vpack.c.b16 %v130, %v126
    %v139 = vpack.c.b16 %v131, %v127
    %v140 = vpack.c.b16 %v132, %v128
    %vm145 = vcmask 228352
    %v147 = vsel %vm145, %v99, 0
    %vm149 = vcmask 1045504
    %v151 = vsel %vm149, %v137, 0
    %v154 = vsel %vm149, %v138, 0
    %v157 = vsel %vm149, %v139, 0
    %v160 = vsel %vm149, %v140, 0
    %162 = vmatpush.bf16.msra.mxu0 0
    %163 = vmatpush.bf16.msra.mxu0 0
    %164 = vmatpush.bf16.msra.mxu0 0
    %165 = vmatpush.bf16.msra.mxu0 0
    %166 = vmatpush.bf16.msra.mxu0 0
    %167 = vmatpush.bf16.msra.mxu0 0
    %168 = vmatpush.bf16.msra.mxu0 %v151
    %169 = vmatpush.bf16.msra.mxu0 %v133
    %170 = vmatmul.bf16.gmra.mxu0 %v147
    %v171 = vpop.f32.mrf.mxu0
    %v172 = vadd.f32 %v101, %v171
    %v173 = vpop.f32.mrf.mxu0
    %174 = vdwg.mxu0
    %175 = vmatpush.bf16.msra.mxu0 0
    %176 = vmatpush.bf16.msra.mxu0 0
    %177 = vmatpush.bf16.msra.mxu0 0
    %178 = vmatpush.bf16.msra.mxu0 0
    %179 = vmatpush.bf16.msra.mxu0 0
    %180 = vmatpush.bf16.msra.mxu0 0
    %181 = vmatpush.bf16.msra.mxu0 %v154
    %182 = vmatpush.bf16.msra.mxu0 %v134
    %183 = vmatmul.bf16.gmra.mxu0 %v147
    %v184 = vpop.f32.mrf.mxu0
    %v185 = vadd.f32 %v102, %v184
    %v186 = vpop.f32.mrf.mxu0
    %187 = vdwg.mxu0
    %188 = vmatpush.bf16.msra.mxu0 0
    %189 = vmatpush.bf16.msra.mxu0 0
    %190 = vmatpush.bf16.msra.mxu0 0
    %191 = vmatpush.bf16.msra.mxu0 0
    %192 = vmatpush.bf16.msra.mxu0 0
    %193 = vmatpush.bf16.msra.mxu0 0
    %194 = vmatpush.bf16.msra.mxu0 %v157
    %195 = vmatpush.bf16.msra.mxu0 %v135
    %196 = vmatmul.bf16.gmra.mxu0 %v147
    %v197 = vpop.f32.mrf.mxu0
    %v198 = vadd.f32 %v103, %v197
    %v199 = vpop.f32.mrf.mxu0
    %200 = vdwg.mxu0
    %201 = vmatpush.bf16.msra.mxu0 0
    %202 = vmatpush.bf16.msra.mxu0 0
    %203 = vmatpush.bf16.msra.mxu0 0
    %204 = vmatpush.bf16.msra.mxu0 0
    %205 = vmatpush.bf16.msra.mxu0 0
    %206 = vmatpush.bf16.msra.mxu0 0
    %207 = vmatpush.bf16.msra.mxu0 %v160
    %208 = vmatpush.bf16.msra.mxu0 %v136
    %209 = vmatmul.bf16.gmra.mxu0 %v147
    %v210 = vpop.f32.mrf.mxu0
    %v211 = vadd.f32 %v104, %v210
    %v212 = vpop.f32.mrf.mxu0
    %213 = vdwg.mxu0
    %v214 = vld [vmem:[%s0 + $0x8] sm:$0xff]
    %v215 = vld [vmem:[%s0 + $0x10] sm:$0xff]
    %v216 = vld [vmem:[%s0 + $0x18] sm:$0xff]
    %v217 = vld [vmem:[%s0 + $0x20] sm:$0xff]
    %v218 = vld [vmem:[%s0 + $0x28] sm:$0xff]
    %v219 = vld [vmem:[%s0 + $0x30] sm:$0xff]
    %v220 = vld [vmem:[%s0 + $0x38] sm:$0xff]
    %v221 = vpack.c.bf16 %v215, %v214
    %v222 = vpack.c.bf16 %v217, %v216
    %v223 = vpack.c.bf16 %v219, %v218
    %v224 = vpack.c.bf16 %v220, %v220
    %v226 = vsel %vm145, %v221, 0
    %v229 = vsel %vm145, %v222, 0
    %v232 = vsel %vm145, %v223, 0
    %v235 = vsel %vm145, %v224, 0
    %237 = vmatpush.bf16.msra.mxu0 0
    %238 = vmatpush.bf16.msra.mxu0 0
    %239 = vmatpush.bf16.msra.mxu0 0
    %240 = vmatpush.bf16.msra.mxu0 0
    %241 = vmatpush.bf16.msra.mxu0 0
    %242 = vmatpush.bf16.msra.mxu0 0
    %243 = vmatpush.bf16.msra.mxu0 %v151
    %244 = vmatpush.bf16.msra.mxu0 %v133
    %245 = vmatmul.bf16.gmra.mxu0 %v226
    %v246 = vpop.f32.mrf.mxu0
    %v247 = vadd.f32 %v101, %v246
    %v248 = vpop.f32.mrf.mxu0
    %v249 = vadd.f32 %v101, %v248
    %250 = vmatmul.bf16.gmra.mxu0 %v229
    %v251 = vpop.f32.mrf.mxu0
    %v252 = vadd.f32 %v101, %v251
    %v253 = vpop.f32.mrf.mxu0
    %v254 = vadd.f32 %v101, %v253
    %255 = vmatmul.bf16.gmra.mxu0 %v232
    %v256 = vpop.f32.mrf.mxu0
    %v257 = vadd.f32 %v101, %v256
    %v258 = vpop.f32.mrf.mxu0
    %v259 = vadd.f32 %v101, %v258
    %260 = vmatmul.bf16.gmra.mxu0 %v235
    %v261 = vpop.f32.mrf.mxu0
    %v262 = vadd.f32 %v101, %v261
    %v263 = vpop.f32.mrf.mxu0
    %264 = vdwg.mxu0
    %265 = vmatpush.bf16.msra.mxu0 0
    %266 = vmatpush.bf16.msra.mxu0 0
    %267 = vmatpush.bf16.msra.mxu0 0
    %268 = vmatpush.bf16.msra.mxu0 0
    %269 = vmatpush.bf16.msra.mxu0 0
    %270 = vmatpush.bf16.msra.mxu0 0
    %271 = vmatpush.bf16.msra.mxu0 %v154
    %272 = vmatpush.bf16.msra.mxu0 %v134
    %273 = vmatmul.bf16.gmra.mxu0 %v226
    %v274 = vpop.f32.mrf.mxu0
    %v275 = vadd.f32 %v102, %v274
    %v276 = vpop.f32.mrf.mxu0
    %v277 = vadd.f32 %v102, %v276
    %278 = vmatmul.bf16.gmra.mxu0 %v229
    %v279 = vpop.f32.mrf.mxu0
    %v280 = vadd.f32 %v102, %v279
    %v281 = vpop.f32.mrf.mxu0
    %v282 = vadd.f32 %v102, %v281
    %283 = vmatmul.bf16.gmra.mxu0 %v232
    %v284 = vpop.f32.mrf.mxu0
    %v285 = vadd.f32 %v102, %v284
    %v286 = vpop.f32.mrf.mxu0
    %v287 = vadd.f32 %v102, %v286
    %288 = vmatmul.bf16.gmra.mxu0 %v235
    %v289 = vpop.f32.mrf.mxu0
    %v290 = vadd.f32 %v102, %v289
    %v291 = vpop.f32.mrf.mxu0
    %292 = vdwg.mxu0
    %293 = vmatpush.bf16.msra.mxu0 0
    %294 = vmatpush.bf16.msra.mxu0 0
    %295 = vmatpush.bf16.msra.mxu0 0
    %296 = vmatpush.bf16.msra.mxu0 0
    %297 = vmatpush.bf16.msra.mxu0 0
    %298 = vmatpush.bf16.msra.mxu0 0
    %299 = vmatpush.bf16.msra.mxu0 %v157
    %300 = vmatpush.bf16.msra.mxu0 %v135
    %301 = vmatmul.bf16.gmra.mxu0 %v226
    %v302 = vpop.f32.mrf.mxu0
    %v303 = vadd.f32 %v103, %v302
    %v304 = vpop.f32.mrf.mxu0
    %v305 = vadd.f32 %v103, %v304
    %306 = vmatmul.bf16.gmra.mxu0 %v229
    %v307 = vpop.f32.mrf.mxu0
    %v308 = vadd.f32 %v103, %v307
    %v309 = vpop.f32.mrf.mxu0
    %v310 = vadd.f32 %v103, %v309
    %311 = vmatmul.bf16.gmra.mxu0 %v232
    %v312 = vpop.f32.mrf.mxu0
    %v313 = vadd.f32 %v103, %v312
    %v314 = vpop.f32.mrf.mxu0
    %v315 = vadd.f32 %v103, %v314
    %316 = vmatmul.bf16.gmra.mxu0 %v235
    %v317 = vpop.f32.mrf.mxu0
    %v318 = vadd.f32 %v103, %v317
    %v319 = vpop.f32.mrf.mxu0
    %320 = vdwg.mxu0
    %321 = vmatpush.bf16.msra.mxu0 0
    %322 = vmatpush.bf16.msra.mxu0 0
    %323 = vmatpush.bf16.msra.mxu0 0
    %324 = vmatpush.bf16.msra.mxu0 0
    %325 = vmatpush.bf16.msra.mxu0 0
    %326 = vmatpush.bf16.msra.mxu0 0
    %327 = vmatpush.bf16.msra.mxu0 %v160
    %328 = vmatpush.bf16.msra.mxu0 %v136
    %329 = vmatmul.bf16.gmra.mxu0 %v226
    %v330 = vpop.f32.mrf.mxu0
    %v331 = vadd.f32 %v104, %v330
    %v332 = vpop.f32.mrf.mxu0
    %v333 = vadd.f32 %v104, %v332
    %334 = vmatmul.bf16.gmra.mxu0 %v229
    %v335 = vpop.f32.mrf.mxu0
    %v336 = vadd.f32 %v104, %v335
    %v337 = vpop.f32.mrf.mxu0
    %v338 = vadd.f32 %v104, %v337
    %339 = vmatmul.bf16.gmra.mxu0 %v232
    %v340 = vpop.f32.mrf.mxu0
    %v341 = vadd.f32 %v104, %v340
    %v342 = vpop.f32.mrf.mxu0
    %v343 = vadd.f32 %v104, %v342
    %344 = vmatmul.bf16.gmra.mxu0 %v235
    %v345 = vpop.f32.mrf.mxu0
    %v346 = vadd.f32 %v104, %v345
    %v347 = vpop.f32.mrf.mxu0
    %348 = vdwg.mxu0
    %349 = vst [vmem:[#allocation2] sm:$0xff] %v247
    %350 = vst [vmem:[#allocation2 + $0x8] sm:$0xff] %v275
    %351 = vst [vmem:[#allocation2 + $0x10] sm:$0xff] %v303
    %352 = vst [vmem:[#allocation2 + $0x18] sm:$0xff] %v331
    %353 = vst [vmem:[#allocation2 + $0x20] sm:$0xff] %v249
    %354 = vst [vmem:[#allocation2 + $0x28] sm:$0xff] %v277
    %355 = vst [vmem:[#allocation2 + $0x30] sm:$0xff] %v305
    %356 = vst [vmem:[#allocation2 + $0x38] sm:$0xff] %v333
    %357 = vst [vmem:[#allocation2 + $0x40] sm:$0xff] %v252
    %358 = vst [vmem:[#allocation2 + $0x48] sm:$0xff] %v280
    %359 = vst [vmem:[#allocation2 + $0x50] sm:$0xff] %v308
    %360 = vst [vmem:[#allocation2 + $0x58] sm:$0xff] %v336
    %361 = vst [vmem:[#allocation2 + $0x60] sm:$0xff] %v254
    %362 = vst [vmem:[#allocation2 + $0x68] sm:$0xff] %v282
    %363 = vst [vmem:[#allocation2 + $0x70] sm:$0xff] %v310
    %364 = vst [vmem:[#allocation2 + $0x78] sm:$0xff] %v338
    %365 = vst [vmem:[#allocation2 + $0x80] sm:$0xff] %v257
    %366 = vst [vmem:[#allocation2 + $0x88] sm:$0xff] %v285
    %367 = vst [vmem:[#allocation2 + $0x90] sm:$0xff] %v313
    %368 = vst [vmem:[#allocation2 + $0x98] sm:$0xff] %v341
    %369 = vst [vmem:[#allocation2 + $0xa0] sm:$0xff] %v259
    %370 = vst [vmem:[#allocation2 + $0xa8] sm:$0xff] %v287
    %371 = vst [vmem:[#allocation2 + $0xb0] sm:$0xff] %v315
    %372 = vst [vmem:[#allocation2 + $0xb8] sm:$0xff] %v343
    %373 = vst [vmem:[#allocation2 + $0xc0] sm:$0xff] %v262
    %374 = vst [vmem:[#allocation2 + $0xc8] sm:$0xff] %v290
    %375 = vst [vmem:[#allocation2 + $0xd0] sm:$0xff] %v318
    %376 = vst [vmem:[#allocation2 + $0xd8] sm:$0xff] %v346
    %v377 = vxor.u32 %v172, 2147483648
    %v378 = vxor.u32 %v185, 2147483648
    %v379 = vxor.u32 %v198, 2147483648
    %v380 = vmul.f32 %v377, 1.442695
    %v381 = vpow.pop %v380
    %v382 = vmul.f32 %v378, 1.442695
    %v383 = vpow.pop %v382
    %v384 = vmul.f32 %v379, 1.442695
    %v385 = vpow.pop %v384
    %v386 = vadd.f32 %v381, 1.0
    %v387 = vadd.f32 %v383, 1.0
    %v388 = vadd.f32 %v385, 1.0
    %v389 = vrcp.pop %v386
    %v390 = vmul.f32 %v386, %v389
    %v391 = vsub.f32 1.0, %v390
    %v392 = vmul.f32 %v389, %v391
    %v393 = vadd.f32 %v389, %v392
    %vm394 = vweird.f32 %v386
    %vm395 = vweird.f32 %v389
    %vm396 = vmor %vm394, %vm395
    %v397 = vsel %vm396, %v389, %v393
    %v398 = vand.u32 2147483647, %v386
    %vm399 = vcmp.eq.f32.partialorder %v398, 8.507059e+37
    %v400 = vand.u32 %v386, 2147483648
    %v401 = vor.u32 1.1754944e-38, %v400
    %v402 = vsel %vm399, %v401, %v397
    %v403 = vmul.f32 1.0, %v402
    %v404 = vrcp.pop %v387
    %v405 = vmul.f32 %v387, %v404
    %v406 = vsub.f32 1.0, %v405
    %v407 = vmul.f32 %v404, %v406
    %v408 = vadd.f32 %v404, %v407
    %vm409 = vweird.f32 %v387
    %vm410 = vweird.f32 %v404
    %vm411 = vmor %vm409, %vm410
    %v412 = vsel %vm411, %v404, %v408
    %v413 = vand.u32 2147483647, %v387
    %vm414 = vcmp.eq.f32.partialorder %v413, 8.507059e+37
    %v415 = vand.u32 %v387, 2147483648
    %v416 = vor.u32 1.1754944e-38, %v415
    %v417 = vsel %vm414, %v416, %v412
    %v418 = vmul.f32 1.0, %v417
    %v419 = vrcp.pop %v388
    %v420 = vmul.f32 %v388, %v419
    %v421 = vsub.f32 1.0, %v420
    %v422 = vmul.f32 %v419, %v421
    %v423 = vadd.f32 %v419, %v422
    %vm424 = vweird.f32 %v388
    %vm425 = vweird.f32 %v419
    %vm426 = vmor %vm424, %vm425
    %v427 = vsel %vm426, %v419, %v423
    %v428 = vand.u32 2147483647, %v388
    %vm429 = vcmp.eq.f32.partialorder %v428, 8.507059e+37
    %v430 = vand.u32 %v388, 2147483648
    %v431 = vor.u32 1.1754944e-38, %v430
    %v432 = vsel %vm429, %v431, %v427
    %v433 = vmul.f32 1.0, %v432
    %v434 = vtanh.pop %v211
    %v435 = vmul.f32 %v418, 0.0
    %v436 = vmul.f32 %v403, %v434
    %v437 = vadd.f32 %v435, %v436
    %v438 = vtanh.pop %v437
    %v439 = vmul.f32 %v433, %v438
    %v440 = vld [vmem:[#allocation2] sm:$0xff]
    %v441 = vld [vmem:[#allocation2 + $0x8] sm:$0xff]
    %v442 = vld [vmem:[#allocation2 + $0x10] sm:$0xff]
    %v443 = vld [vmem:[#allocation2 + $0x18] sm:$0xff]
    %v444 = vpack.c.bf16 %v439, %v439
    %v477 = vunpack.c.l.b16 %v65
    %v478 = vunpack.c.h.b16 %v65
    %v479 = vunpack.c.l.b16 %v66
    %v480 = vunpack.c.h.b16 %v66
    %v481 = vunpack.c.l.b16 %v67
    %v482 = vunpack.c.h.b16 %v67
    %v483 = vunpack.c.l.b16 %v68
    %v484 = vunpack.c.h.b16 %v68
    %v485 = vunpack.c.l.b16 %v69
    %v486 = vunpack.c.h.b16 %v69
    %v487 = vunpack.c.l.b16 %v70
    %v488 = vunpack.c.h.b16 %v70
    %v489 = vunpack.c.l.b16 %v71
    %v490 = vunpack.c.h.b16 %v71
    %v491 = vunpack.c.l.b16 %v72
    %v492 = vunpack.c.h.b16 %v72
    %v493 = vunpack.c.l.b16 %v73
    %v494 = vunpack.c.h.b16 %v73
    %v495 = vunpack.c.l.b16 %v74
    %v496 = vunpack.c.h.b16 %v74
    %v497 = vunpack.c.l.b16 %v75
    %v498 = vunpack.c.h.b16 %v75
    %v499 = vunpack.c.l.b16 %v76
    %v500 = vunpack.c.h.b16 %v76
    %v501 = vunpack.c.l.b16 %v77
    %v502 = vunpack.c.h.b16 %v77
    %v503 = vunpack.c.l.b16 %v78
    %v504 = vunpack.c.h.b16 %v78
    %v505 = vunpack.c.l.b16 %v79
    %v506 = vunpack.c.h.b16 %v79
    %v507 = vunpack.c.l.b16 %v80
    %v508 = vunpack.c.h.b16 %v80
    %v509 = vunpack.c.l.b16 %v81
    %v510 = vunpack.c.h.b16 %v81
    %v511 = vunpack.c.l.b16 %v82
    %v512 = vunpack.c.h.b16 %v82
    %v513 = vunpack.c.l.b16 %v83
    %v514 = vunpack.c.h.b16 %v83
    %v515 = vunpack.c.l.b16 %v84
    %v516 = vunpack.c.h.b16 %v84
    %v517 = vunpack.c.l.b16 %v85
    %v518 = vunpack.c.h.b16 %v85
    %v519 = vunpack.c.l.b16 %v86
    %v520 = vunpack.c.h.b16 %v86
    %v521 = vunpack.c.l.b16 %v87
    %v522 = vunpack.c.h.b16 %v87
    %v523 = vunpack.c.l.b16 %v88
    %v524 = vunpack.c.h.b16 %v88
    %v525 = vunpack.c.l.b16 %v89
    %v526 = vunpack.c.h.b16 %v89
    %v527 = vunpack.c.l.b16 %v90
    %v528 = vunpack.c.h.b16 %v90
    %v529 = vunpack.c.l.b16 %v91
    %v530 = vunpack.c.h.b16 %v91
    %v531 = vunpack.c.l.b16 %v92
    %v532 = vunpack.c.h.b16 %v92
    %v533 = vunpack.c.l.b16 %v93
    %v534 = vunpack.c.h.b16 %v93
    %v535 = vunpack.c.l.b16 %v94
    %v536 = vunpack.c.h.b16 %v94
    %v537 = vunpack.c.l.b16 %v95
    %v538 = vunpack.c.h.b16 %v95
    %v539 = vunpack.c.l.b16 %v96
    %v540 = vunpack.c.h.b16 %v96
    %v541 = vpack.c.b16 %v481, %v477
    %v542 = vpack.c.b16 %v482, %v478
    %v543 = vpack.c.b16 %v483, %v479
    %v544 = vpack.c.b16 %v484, %v480
    %v545 = vpack.c.b16 %v489, %v485
    %v546 = vpack.c.b16 %v490, %v486
    %v547 = vpack.c.b16 %v491, %v487
    %v548 = vpack.c.b16 %v492, %v488
    %v549 = vpack.c.b16 %v497, %v493
    %v550 = vpack.c.b16 %v498, %v494
    %v551 = vpack.c.b16 %v499, %v495
    %v552 = vpack.c.b16 %v500, %v496
    %v553 = vpack.c.b16 %v505, %v501
    %v554 = vpack.c.b16 %v506, %v502
    %v555 = vpack.c.b16 %v507, %v503
    %v556 = vpack.c.b16 %v508, %v504
    %v557 = vpack.c.b16 %v513, %v509
    %v558 = vpack.c.b16 %v514, %v510
    %v559 = vpack.c.b16 %v515, %v511
    %v560 = vpack.c.b16 %v516, %v512
    %v561 = vpack.c.b16 %v521, %v517
    %v562 = vpack.c.b16 %v522, %v518
    %v563 = vpack.c.b16 %v523, %v519
    %v564 = vpack.c.b16 %v524, %v520
    %v565 = vpack.c.b16 %v529, %v525
    %v566 = vpack.c.b16 %v530, %v526
    %v567 = vpack.c.b16 %v531, %v527
    %v568 = vpack.c.b16 %v532, %v528
    %v569 = vpack.c.b16 %v537, %v533
    %v570 = vpack.c.b16 %v538, %v534
    %v571 = vpack.c.b16 %v539, %v535
    %v572 = vpack.c.b16 %v540, %v536
    %605 = vmatpush.bf16.msra.mxu0 %v569
    %606 = vmatpush.bf16.msra.mxu0 %v565
    %607 = vmatpush.bf16.msra.mxu0 %v561
    %608 = vmatpush.bf16.msra.mxu0 %v557
    %609 = vmatpush.bf16.msra.mxu0 %v553
    %610 = vmatpush.bf16.msra.mxu0 %v549
    %611 = vmatpush.bf16.msra.mxu0 %v545
    %612 = vmatpush.bf16.msra.mxu0 %v541
    %613 = vmatmul.bf16.gmra.mxu0 %v444
    %v614 = vpop.f32.mrf.mxu0
    %v615 = vadd.f32 0.0, %v614
    %v616 = vpop.f32.mrf.mxu0
    %617 = vdwg.mxu0
    %618 = vmatpush.bf16.msra.mxu0 %v570
    %619 = vmatpush.bf16.msra.mxu0 %v566
    %620 = vmatpush.bf16.msra.mxu0 %v562
    %621 = vmatpush.bf16.msra.mxu0 %v558
    %622 = vmatpush.bf16.msra.mxu0 %v554
    %623 = vmatpush.bf16.msra.mxu0 %v550
    %624 = vmatpush.bf16.msra.mxu0 %v546
    %625 = vmatpush.bf16.msra.mxu0 %v542
    %626 = vmatmul.bf16.gmra.mxu0 %v444
    %v627 = vpop.f32.mrf.mxu0
    %v628 = vadd.f32 0.0, %v627
    %v629 = vpop.f32.mrf.mxu0
    %630 = vdwg.mxu0
    %631 = vmatpush.bf16.msra.mxu0 %v571
    %632 = vmatpush.bf16.msra.mxu0 %v567
    %633 = vmatpush.bf16.msra.mxu0 %v563
    %634 = vmatpush.bf16.msra.mxu0 %v559
    %635 = vmatpush.bf16.msra.mxu0 %v555
    %636 = vmatpush.bf16.msra.mxu0 %v551
    %637 = vmatpush.bf16.msra.mxu0 %v547
    %638 = vmatpush.bf16.msra.mxu0 %v543
    %639 = vmatmul.bf16.gmra.mxu0 %v444
    %v640 = vpop.f32.mrf.mxu0
    %v641 = vadd.f32 0.0, %v640
    %v642 = vpop.f32.mrf.mxu0
    %643 = vdwg.mxu0
    %644 = vmatpush.bf16.msra.mxu0 %v572
    %645 = vmatpush.bf16.msra.mxu0 %v568
    %646 = vmatpush.bf16.msra.mxu0 %v564
    %647 = vmatpush.bf16.msra.mxu0 %v560
    %648 = vmatpush.bf16.msra.mxu0 %v556
    %649 = vmatpush.bf16.msra.mxu0 %v552
    %650 = vmatpush.bf16.msra.mxu0 %v548
    %651 = vmatpush.bf16.msra.mxu0 %v544
    %652 = vmatmul.bf16.gmra.mxu0 %v444
    %v653 = vpop.f32.mrf.mxu0
    %v654 = vadd.f32 0.0, %v653
    %v655 = vpop.f32.mrf.mxu0
    %656 = vdwg.mxu0
    %v657 = vadd.f32 %v440, %v615
    %v658 = vadd.f32 %v441, %v628
    %v659 = vadd.f32 %v442, %v641
    %v660 = vadd.f32 %v443, %v654
    %v661 = vxor.u32 %v657, 2147483648
    %v662 = vxor.u32 %v658, 2147483648
    %v663 = vxor.u32 %v659, 2147483648
    %v664 = vmul.f32 %v661, 1.442695
    %v665 = vpow.pop %v664
    %v666 = vmul.f32 %v662, 1.442695
    %v667 = vpow.pop %v666
    %v668 = vmul.f32 %v663, 1.442695
    %v669 = vpow.pop %v668
    %v670 = vadd.f32 %v665, 1.0
    %v671 = vadd.f32 %v667, 1.0
    %v672 = vadd.f32 %v669, 1.0
    %v673 = vrcp.pop %v670
    %v674 = vmul.f32 %v670, %v673
    %v675 = vsub.f32 1.0, %v674
    %v676 = vmul.f32 %v673, %v675
    %v677 = vadd.f32 %v673, %v676
    %vm678 = vweird.f32 %v670
    %vm679 = vweird.f32 %v673
    %vm680 = vmor %vm678, %vm679
    %v681 = vsel %vm680, %v673, %v677
    %v682 = vand.u32 2147483647, %v670
    %vm683 = vcmp.eq.f32.partialorder %v682, 8.507059e+37
    %v684 = vand.u32 %v670, 2147483648
    %v685 = vor.u32 1.1754944e-38, %v684
    %v686 = vsel %vm683, %v685, %v681
    %v687 = vmul.f32 1.0, %v686
    %v688 = vrcp.pop %v671
    %v689 = vmul.f32 %v671, %v688
    %v690 = vsub.f32 1.0, %v689
    %v691 = vmul.f32 %v688, %v690
    %v692 = vadd.f32 %v688, %v691
    %vm693 = vweird.f32 %v671
    %vm694 = vweird.f32 %v688
    %vm695 = vmor %vm693, %vm694
    %v696 = vsel %vm695, %v688, %v692
    %v697 = vand.u32 2147483647, %v671
    %vm698 = vcmp.eq.f32.partialorder %v697, 8.507059e+37
    %v699 = vand.u32 %v671, 2147483648
    %v700 = vor.u32 1.1754944e-38, %v699
    %v701 = vsel %vm698, %v700, %v696
    %v702 = vmul.f32 1.0, %v701
    %v703 = vrcp.pop %v672
    %v704 = vmul.f32 %v672, %v703
    %v705 = vsub.f32 1.0, %v704
    %v706 = vmul.f32 %v703, %v705
    %v707 = vadd.f32 %v703, %v706
    %vm708 = vweird.f32 %v672
    %vm709 = vweird.f32 %v703
    %vm710 = vmor %vm708, %vm709
    %v711 = vsel %vm710, %v703, %v707
    %v712 = vand.u32 2147483647, %v672
    %vm713 = vcmp.eq.f32.partialorder %v712, 8.507059e+37
    %v714 = vand.u32 %v672, 2147483648
    %v715 = vor.u32 1.1754944e-38, %v714
    %v716 = vsel %vm713, %v715, %v711
    %v717 = vmul.f32 1.0, %v716
    %v718 = vtanh.pop %v660
    %v719 = vmul.f32 %v437, %v702
    %v720 = vmul.f32 %v687, %v718
    %v721 = vadd.f32 %v719, %v720
    %v722 = vtanh.pop %v721
    %v723 = vmul.f32 %v717, %v722
    %v724 = vld [vmem:[#allocation2 + $0x20] sm:$0xff]
    %v725 = vld [vmem:[#allocation2 + $0x28] sm:$0xff]
    %v726 = vld [vmem:[#allocation2 + $0x30] sm:$0xff]
    %v727 = vld [vmem:[#allocation2 + $0x38] sm:$0xff]
    %v728 = vpack.c.bf16 %v723, %v723
    %729 = vmatpush.bf16.msra.mxu0 %v569
    %730 = vmatpush.bf16.msra.mxu0 %v565
    %731 = vmatpush.bf16.msra.mxu0 %v561
    %732 = vmatpush.bf16.msra.mxu0 %v557
    %733 = vmatpush.bf16.msra.mxu0 %v553
    %734 = vmatpush.bf16.msra.mxu0 %v549
    %735 = vmatpush.bf16.msra.mxu0 %v545
    %736 = vmatpush.bf16.msra.mxu0 %v541
    %737 = vmatmul.bf16.gmra.mxu0 %v728
    %v738 = vpop.f32.mrf.mxu0
    %v739 = vadd.f32 0.0, %v738
    %v740 = vpop.f32.mrf.mxu0
    %741 = vdwg.mxu0
    %742 = vmatpush.bf16.msra.mxu0 %v570
    %743 = vmatpush.bf16.msra.mxu0 %v566
    %744 = vmatpush.bf16.msra.mxu0 %v562
    %745 = vmatpush.bf16.msra.mxu0 %v558
    %746 = vmatpush.bf16.msra.mxu0 %v554
    %747 = vmatpush.bf16.msra.mxu0 %v550
    %748 = vmatpush.bf16.msra.mxu0 %v546
    %749 = vmatpush.bf16.msra.mxu0 %v542
    %750 = vmatmul.bf16.gmra.mxu0 %v728
    %v751 = vpop.f32.mrf.mxu0
    %v752 = vadd.f32 0.0, %v751
    %v753 = vpop.f32.mrf.mxu0
    %754 = vdwg.mxu0
    %755 = vmatpush.bf16.msra.mxu0 %v571
    %756 = vmatpush.bf16.msra.mxu0 %v567
    %757 = vmatpush.bf16.msra.mxu0 %v563
    %758 = vmatpush.bf16.msra.mxu0 %v559
    %759 = vmatpush.bf16.msra.mxu0 %v555
    %760 = vmatpush.bf16.msra.mxu0 %v551
    %761 = vmatpush.bf16.msra.mxu0 %v547
    %762 = vmatpush.bf16.msra.mxu0 %v543
    %763 = vmatmul.bf16.gmra.mxu0 %v728
    %v764 = vpop.f32.mrf.mxu0
    %v765 = vadd.f32 0.0, %v764
    %v766 = vpop.f32.mrf.mxu0
    %767 = vdwg.mxu0
    %768 = vmatpush.bf16.msra.mxu0 %v572
    %769 = vmatpush.bf16.msra.mxu0 %v568
    %770 = vmatpush.bf16.msra.mxu0 %v564
    %771 = vmatpush.bf16.msra.mxu0 %v560
    %772 = vmatpush.bf16.msra.mxu0 %v556
    %773 = vmatpush.bf16.msra.mxu0 %v552
    %774 = vmatpush.bf16.msra.mxu0 %v548
    %775 = vmatpush.bf16.msra.mxu0 %v544
    %776 = vmatmul.bf16.gmra.mxu0 %v728
    %v777 = vpop.f32.mrf.mxu0
    %v778 = vadd.f32 0.0, %v777
    %v779 = vpop.f32.mrf.mxu0
    %780 = vdwg.mxu0
    %v781 = vadd.f32 %v724, %v739
    %v782 = vadd.f32 %v725, %v752
    %v783 = vadd.f32 %v726, %v765
    %v784 = vadd.f32 %v727, %v778
    %v785 = vxor.u32 %v781, 2147483648
    %v786 = vxor.u32 %v782, 2147483648
    %v787 = vxor.u32 %v783, 2147483648
    %v788 = vmul.f32 %v785, 1.442695
    %v789 = vpow.pop %v788
    %v790 = vmul.f32 %v786, 1.442695
    %v791 = vpow.pop %v790
    %v792 = vmul.f32 %v787, 1.442695
    %v793 = vpow.pop %v792
    %v794 = vadd.f32 %v789, 1.0
    %v795 = vadd.f32 %v791, 1.0
    %v796 = vadd.f32 %v793, 1.0
    %v797 = vrcp.pop %v794
    %v798 = vmul.f32 %v794, %v797
    %v799 = vsub.f32 1.0, %v798
    %v800 = vmul.f32 %v797, %v799
    %v801 = vadd.f32 %v797, %v800
    %vm802 = vweird.f32 %v794
    %vm803 = vweird.f32 %v797
    %vm804 = vmor %vm802, %vm803
    %v805 = vsel %vm804, %v797, %v801
    %v806 = vand.u32 2147483647, %v794
    %vm807 = vcmp.eq.f32.partialorder %v806, 8.507059e+37
    %v808 = vand.u32 %v794, 2147483648
    %v809 = vor.u32 1.1754944e-38, %v808
    %v810 = vsel %vm807, %v809, %v805
    %v811 = vmul.f32 1.0, %v810
    %v812 = vrcp.pop %v795
    %v813 = vmul.f32 %v795, %v812
    %v814 = vsub.f32 1.0, %v813
    %v815 = vmul.f32 %v812, %v814
    %v816 = vadd.f32 %v812, %v815
    %vm817 = vweird.f32 %v795
    %vm818 = vweird.f32 %v812
    %vm819 = vmor %vm817, %vm818
    %v820 = vsel %vm819, %v812, %v816
    %v821 = vand.u32 2147483647, %v795
    %vm822 = vcmp.eq.f32.partialorder %v821, 8.507059e+37
    %v823 = vand.u32 %v795, 2147483648
    %v824 = vor.u32 1.1754944e-38, %v823
    %v825 = vsel %vm822, %v824, %v820
    %v826 = vmul.f32 1.0, %v825
    %v827 = vrcp.pop %v796
    %v828 = vmul.f32 %v796, %v827
    %v829 = vsub.f32 1.0, %v828
    %v830 = vmul.f32 %v827, %v829
    %v831 = vadd.f32 %v827, %v830
    %vm832 = vweird.f32 %v796
    %vm833 = vweird.f32 %v827
    %vm834 = vmor %vm832, %vm833
    %v835 = vsel %vm834, %v827, %v831
    %v836 = vand.u32 2147483647, %v796
    %vm837 = vcmp.eq.f32.partialorder %v836, 8.507059e+37
    %v838 = vand.u32 %v796, 2147483648
    %v839 = vor.u32 1.1754944e-38, %v838
    %v840 = vsel %vm837, %v839, %v835
    %v841 = vmul.f32 1.0, %v840
    %v842 = vtanh.pop %v784
    %v843 = vmul.f32 %v721, %v826
    %v844 = vmul.f32 %v811, %v842
    %v845 = vadd.f32 %v843, %v844
    %v846 = vtanh.pop %v845
    %v847 = vmul.f32 %v841, %v846
    %v848 = vld [vmem:[#allocation2 + $0x40] sm:$0xff]
    %v849 = vld [vmem:[#allocation2 + $0x48] sm:$0xff]
    %v850 = vld [vmem:[#allocation2 + $0x50] sm:$0xff]
    %v851 = vld [vmem:[#allocation2 + $0x58] sm:$0xff]
    %v852 = vpack.c.bf16 %v847, %v847
    %853 = vmatpush.bf16.msra.mxu0 %v569
    %854 = vmatpush.bf16.msra.mxu0 %v565
    %855 = vmatpush.bf16.msra.mxu0 %v561
    %856 = vmatpush.bf16.msra.mxu0 %v557
    %857 = vmatpush.bf16.msra.mxu0 %v553
    %858 = vmatpush.bf16.msra.mxu0 %v549
    %859 = vmatpush.bf16.msra.mxu0 %v545
    %860 = vmatpush.bf16.msra.mxu0 %v541
    %861 = vmatmul.bf16.gmra.mxu0 %v852
    %v862 = vpop.f32.mrf.mxu0
    %v863 = vadd.f32 0.0, %v862
    %v864 = vpop.f32.mrf.mxu0
    %865 = vdwg.mxu0
    %866 = vmatpush.bf16.msra.mxu0 %v570
    %867 = vmatpush.bf16.msra.mxu0 %v566
    %868 = vmatpush.bf16.msra.mxu0 %v562
    %869 = vmatpush.bf16.msra.mxu0 %v558
    %870 = vmatpush.bf16.msra.mxu0 %v554
    %871 = vmatpush.bf16.msra.mxu0 %v550
    %872 = vmatpush.bf16.msra.mxu0 %v546
    %873 = vmatpush.bf16.msra.mxu0 %v542
    %874 = vmatmul.bf16.gmra.mxu0 %v852
    %v875 = vpop.f32.mrf.mxu0
    %v876 = vadd.f32 0.0, %v875
    %v877 = vpop.f32.mrf.mxu0
    %878 = vdwg.mxu0
    %879 = vmatpush.bf16.msra.mxu0 %v571
    %880 = vmatpush.bf16.msra.mxu0 %v567
    %881 = vmatpush.bf16.msra.mxu0 %v563
    %882 = vmatpush.bf16.msra.mxu0 %v559
    %883 = vmatpush.bf16.msra.mxu0 %v555
    %884 = vmatpush.bf16.msra.mxu0 %v551
    %885 = vmatpush.bf16.msra.mxu0 %v547
    %886 = vmatpush.bf16.msra.mxu0 %v543
    %887 = vmatmul.bf16.gmra.mxu0 %v852
    %v888 = vpop.f32.mrf.mxu0
    %v889 = vadd.f32 0.0, %v888
    %v890 = vpop.f32.mrf.mxu0
    %891 = vdwg.mxu0
    %892 = vmatpush.bf16.msra.mxu0 %v572
    %893 = vmatpush.bf16.msra.mxu0 %v568
    %894 = vmatpush.bf16.msra.mxu0 %v564
    %895 = vmatpush.bf16.msra.mxu0 %v560
    %896 = vmatpush.bf16.msra.mxu0 %v556
    %897 = vmatpush.bf16.msra.mxu0 %v552
    %898 = vmatpush.bf16.msra.mxu0 %v548
    %899 = vmatpush.bf16.msra.mxu0 %v544
    %900 = vmatmul.bf16.gmra.mxu0 %v852
    %v901 = vpop.f32.mrf.mxu0
    %v902 = vadd.f32 0.0, %v901
    %v903 = vpop.f32.mrf.mxu0
    %904 = vdwg.mxu0
    %v905 = vadd.f32 %v848, %v863
    %v906 = vadd.f32 %v849, %v876
    %v907 = vadd.f32 %v850, %v889
    %v908 = vadd.f32 %v851, %v902
    %v909 = vxor.u32 %v905, 2147483648
    %v910 = vxor.u32 %v906, 2147483648
    %v911 = vxor.u32 %v907, 2147483648
    %v912 = vmul.f32 %v909, 1.442695
    %v913 = vpow.pop %v912
    %v914 = vmul.f32 %v910, 1.442695
    %v915 = vpow.pop %v914
    %v916 = vmul.f32 %v911, 1.442695
    %v917 = vpow.pop %v916
    %v918 = vadd.f32 %v913, 1.0
    %v919 = vadd.f32 %v915, 1.0
    %v920 = vadd.f32 %v917, 1.0
    %v921 = vrcp.pop %v918
    %v922 = vmul.f32 %v918, %v921
    %v923 = vsub.f32 1.0, %v922
    %v924 = vmul.f32 %v921, %v923
    %v925 = vadd.f32 %v921, %v924
    %vm926 = vweird.f32 %v918
    %vm927 = vweird.f32 %v921
    %vm928 = vmor %vm926, %vm927
    %v929 = vsel %vm928, %v921, %v925
    %v930 = vand.u32 2147483647, %v918
    %vm931 = vcmp.eq.f32.partialorder %v930, 8.507059e+37
    %v932 = vand.u32 %v918, 2147483648
    %v933 = vor.u32 1.1754944e-38, %v932
    %v934 = vsel %vm931, %v933, %v929
    %v935 = vmul.f32 1.0, %v934
    %v936 = vrcp.pop %v919
    %v937 = vmul.f32 %v919, %v936
    %v938 = vsub.f32 1.0, %v937
    %v939 = vmul.f32 %v936, %v938
    %v940 = vadd.f32 %v936, %v939
    %vm941 = vweird.f32 %v919
    %vm942 = vweird.f32 %v936
    %vm943 = vmor %vm941, %vm942
    %v944 = vsel %vm943, %v936, %v940
    %v945 = vand.u32 2147483647, %v919
    %vm946 = vcmp.eq.f32.partialorder %v945, 8.507059e+37
    %v947 = vand.u32 %v919, 2147483648
    %v948 = vor.u32 1.1754944e-38, %v947
    %v949 = vsel %vm946, %v948, %v944
    %v950 = vmul.f32 1.0, %v949
    %v951 = vrcp.pop %v920
    %v952 = vmul.f32 %v920, %v951
    %v953 = vsub.f32 1.0, %v952
    %v954 = vmul.f32 %v951, %v953
    %v955 = vadd.f32 %v951, %v954
    %vm956 = vweird.f32 %v920
    %vm957 = vweird.f32 %v951
    %vm958 = vmor %vm956, %vm957
    %v959 = vsel %vm958, %v951, %v955
    %v960 = vand.u32 2147483647, %v920
    %vm961 = vcmp.eq.f32.partialorder %v960, 8.507059e+37
    %v962 = vand.u32 %v920, 2147483648
    %v963 = vor.u32 1.1754944e-38, %v962
    %v964 = vsel %vm961, %v963, %v959
    %v965 = vmul.f32 1.0, %v964
    %v966 = vtanh.pop %v908
    %v967 = vmul.f32 %v845, %v950
    %v968 = vmul.f32 %v935, %v966
    %v969 = vadd.f32 %v967, %v968
    %v970 = vtanh.pop %v969
    %v971 = vmul.f32 %v965, %v970
    %v972 = vld [vmem:[#allocation2 + $0x60] sm:$0xff]
    %v973 = vld [vmem:[#allocation2 + $0x68] sm:$0xff]
    %v974 = vld [vmem:[#allocation2 + $0x70] sm:$0xff]
    %v975 = vld [vmem:[#allocation2 + $0x78] sm:$0xff]
    %v976 = vpack.c.bf16 %v971, %v971
    %977 = vmatpush.bf16.msra.mxu0 %v569
    %978 = vmatpush.bf16.msra.mxu0 %v565
    %979 = vmatpush.bf16.msra.mxu0 %v561
    %980 = vmatpush.bf16.msra.mxu0 %v557
    %981 = vmatpush.bf16.msra.mxu0 %v553
    %982 = vmatpush.bf16.msra.mxu0 %v549
    %983 = vmatpush.bf16.msra.mxu0 %v545
    %984 = vmatpush.bf16.msra.mxu0 %v541
    %985 = vmatmul.bf16.gmra.mxu0 %v976
    %v986 = vpop.f32.mrf.mxu0
    %v987 = vadd.f32 0.0, %v986
    %v988 = vpop.f32.mrf.mxu0
    %989 = vdwg.mxu0
    %990 = vmatpush.bf16.msra.mxu0 %v570
    %991 = vmatpush.bf16.msra.mxu0 %v566
    %992 = vmatpush.bf16.msra.mxu0 %v562
    %993 = vmatpush.bf16.msra.mxu0 %v558
    %994 = vmatpush.bf16.msra.mxu0 %v554
    %995 = vmatpush.bf16.msra.mxu0 %v550
    %996 = vmatpush.bf16.msra.mxu0 %v546
    %997 = vmatpush.bf16.msra.mxu0 %v542
    %998 = vmatmul.bf16.gmra.mxu0 %v976
    %v999 = vpop.f32.mrf.mxu0
    %v1000 = vadd.f32 0.0, %v999
    %v1001 = vpop.f32.mrf.mxu0
    %1002 = vdwg.mxu0
    %1003 = vmatpush.bf16.msra.mxu0 %v571
    %1004 = vmatpush.bf16.msra.mxu0 %v567
    %1005 = vmatpush.bf16.msra.mxu0 %v563
    %1006 = vmatpush.bf16.msra.mxu0 %v559
    %1007 = vmatpush.bf16.msra.mxu0 %v555
    %1008 = vmatpush.bf16.msra.mxu0 %v551
    %1009 = vmatpush.bf16.msra.mxu0 %v547
    %1010 = vmatpush.bf16.msra.mxu0 %v543
    %1011 = vmatmul.bf16.gmra.mxu0 %v976
    %v1012 = vpop.f32.mrf.mxu0
    %v1013 = vadd.f32 0.0, %v1012
    %v1014 = vpop.f32.mrf.mxu0
    %1015 = vdwg.mxu0
    %1016 = vmatpush.bf16.msra.mxu0 %v572
    %1017 = vmatpush.bf16.msra.mxu0 %v568
    %1018 = vmatpush.bf16.msra.mxu0 %v564
    %1019 = vmatpush.bf16.msra.mxu0 %v560
    %1020 = vmatpush.bf16.msra.mxu0 %v556
    %1021 = vmatpush.bf16.msra.mxu0 %v552
    %1022 = vmatpush.bf16.msra.mxu0 %v548
    %1023 = vmatpush.bf16.msra.mxu0 %v544
    %1024 = vmatmul.bf16.gmra.mxu0 %v976
    %v1025 = vpop.f32.mrf.mxu0
    %v1026 = vadd.f32 0.0, %v1025
    %v1027 = vpop.f32.mrf.mxu0
    %1028 = vdwg.mxu0
    %v1029 = vadd.f32 %v972, %v987
    %v1030 = vadd.f32 %v973, %v1000
    %v1031 = vadd.f32 %v974, %v1013
    %v1032 = vadd.f32 %v975, %v1026
    %v1033 = vxor.u32 %v1029, 2147483648
    %v1034 = vxor.u32 %v1030, 2147483648
    %v1035 = vxor.u32 %v1031, 2147483648
    %v1036 = vmul.f32 %v1033, 1.442695
    %v1037 = vpow.pop %v1036
    %v1038 = vmul.f32 %v1034, 1.442695
    %v1039 = vpow.pop %v1038
    %v1040 = vmul.f32 %v1035, 1.442695
    %v1041 = vpow.pop %v1040
    %v1042 = vadd.f32 %v1037, 1.0
    %v1043 = vadd.f32 %v1039, 1.0
    %v1044 = vadd.f32 %v1041, 1.0
    %v1045 = vrcp.pop %v1042
    %v1046 = vmul.f32 %v1042, %v1045
    %v1047 = vsub.f32 1.0, %v1046
    %v1048 = vmul.f32 %v1045, %v1047
    %v1049 = vadd.f32 %v1045, %v1048
    %vm1050 = vweird.f32 %v1042
    %vm1051 = vweird.f32 %v1045
    %vm1052 = vmor %vm1050, %vm1051
    %v1053 = vsel %vm1052, %v1045, %v1049
    %v1054 = vand.u32 2147483647, %v1042
    %vm1055 = vcmp.eq.f32.partialorder %v1054, 8.507059e+37
    %v1056 = vand.u32 %v1042, 2147483648
    %v1057 = vor.u32 1.1754944e-38, %v1056
    %v1058 = vsel %vm1055, %v1057, %v1053
    %v1059 = vmul.f32 1.0, %v1058
    %v1060 = vrcp.pop %v1043
    %v1061 = vmul.f32 %v1043, %v1060
    %v1062 = vsub.f32 1.0, %v1061
    %v1063 = vmul.f32 %v1060, %v1062
    %v1064 = vadd.f32 %v1060, %v1063
    %vm1065 = vweird.f32 %v1043
    %vm1066 = vweird.f32 %v1060
    %vm1067 = vmor %vm1065, %vm1066
    %v1068 = vsel %vm1067, %v1060, %v1064
    %v1069 = vand.u32 2147483647, %v1043
    %vm1070 = vcmp.eq.f32.partialorder %v1069, 8.507059e+37
    %v1071 = vand.u32 %v1043, 2147483648
    %v1072 = vor.u32 1.1754944e-38, %v1071
    %v1073 = vsel %vm1070, %v1072, %v1068
    %v1074 = vmul.f32 1.0, %v1073
    %v1075 = vrcp.pop %v1044
    %v1076 = vmul.f32 %v1044, %v1075
    %v1077 = vsub.f32 1.0, %v1076
    %v1078 = vmul.f32 %v1075, %v1077
    %v1079 = vadd.f32 %v1075, %v1078
    %vm1080 = vweird.f32 %v1044
    %vm1081 = vweird.f32 %v1075
    %vm1082 = vmor %vm1080, %vm1081
    %v1083 = vsel %vm1082, %v1075, %v1079
    %v1084 = vand.u32 2147483647, %v1044
    %vm1085 = vcmp.eq.f32.partialorder %v1084, 8.507059e+37
    %v1086 = vand.u32 %v1044, 2147483648
    %v1087 = vor.u32 1.1754944e-38, %v1086
    %v1088 = vsel %vm1085, %v1087, %v1083
    %v1089 = vmul.f32 1.0, %v1088
    %v1090 = vtanh.pop %v1032
    %v1091 = vmul.f32 %v969, %v1074
    %v1092 = vmul.f32 %v1059, %v1090
    %v1093 = vadd.f32 %v1091, %v1092
    %v1094 = vtanh.pop %v1093
    %v1095 = vmul.f32 %v1089, %v1094
    %v1096 = vld [vmem:[#allocation2 + $0x80] sm:$0xff]
    %v1097 = vld [vmem:[#allocation2 + $0x88] sm:$0xff]
    %v1098 = vld [vmem:[#allocation2 + $0x90] sm:$0xff]
    %v1099 = vld [vmem:[#allocation2 + $0x98] sm:$0xff]
    %v1100 = vpack.c.bf16 %v1095, %v1095
    %1101 = vmatpush.bf16.msra.mxu0 %v569
    %1102 = vmatpush.bf16.msra.mxu0 %v565
    %1103 = vmatpush.bf16.msra.mxu0 %v561
    %1104 = vmatpush.bf16.msra.mxu0 %v557
    %1105 = vmatpush.bf16.msra.mxu0 %v553
    %1106 = vmatpush.bf16.msra.mxu0 %v549
    %1107 = vmatpush.bf16.msra.mxu0 %v545
    %1108 = vmatpush.bf16.msra.mxu0 %v541
    %1109 = vmatmul.bf16.gmra.mxu0 %v1100
    %v1110 = vpop.f32.mrf.mxu0
    %v1111 = vadd.f32 0.0, %v1110
    %v1112 = vpop.f32.mrf.mxu0
    %1113 = vdwg.mxu0
    %1114 = vmatpush.bf16.msra.mxu0 %v570
    %1115 = vmatpush.bf16.msra.mxu0 %v566
    %1116 = vmatpush.bf16.msra.mxu0 %v562
    %1117 = vmatpush.bf16.msra.mxu0 %v558
    %1118 = vmatpush.bf16.msra.mxu0 %v554
    %1119 = vmatpush.bf16.msra.mxu0 %v550
    %1120 = vmatpush.bf16.msra.mxu0 %v546
    %1121 = vmatpush.bf16.msra.mxu0 %v542
    %1122 = vmatmul.bf16.gmra.mxu0 %v1100
    %v1123 = vpop.f32.mrf.mxu0
    %v1124 = vadd.f32 0.0, %v1123
    %v1125 = vpop.f32.mrf.mxu0
    %1126 = vdwg.mxu0
    %1127 = vmatpush.bf16.msra.mxu0 %v571
    %1128 = vmatpush.bf16.msra.mxu0 %v567
    %1129 = vmatpush.bf16.msra.mxu0 %v563
    %1130 = vmatpush.bf16.msra.mxu0 %v559
    %1131 = vmatpush.bf16.msra.mxu0 %v555
    %1132 = vmatpush.bf16.msra.mxu0 %v551
    %1133 = vmatpush.bf16.msra.mxu0 %v547
    %1134 = vmatpush.bf16.msra.mxu0 %v543
    %1135 = vmatmul.bf16.gmra.mxu0 %v1100
    %v1136 = vpop.f32.mrf.mxu0
    %v1137 = vadd.f32 0.0, %v1136
    %v1138 = vpop.f32.mrf.mxu0
    %1139 = vdwg.mxu0
    %1140 = vmatpush.bf16.msra.mxu0 %v572
    %1141 = vmatpush.bf16.msra.mxu0 %v568
    %1142 = vmatpush.bf16.msra.mxu0 %v564
    %1143 = vmatpush.bf16.msra.mxu0 %v560
    %1144 = vmatpush.bf16.msra.mxu0 %v556
    %1145 = vmatpush.bf16.msra.mxu0 %v552
    %1146 = vmatpush.bf16.msra.mxu0 %v548
    %1147 = vmatpush.bf16.msra.mxu0 %v544
    %1148 = vmatmul.bf16.gmra.mxu0 %v1100
    %v1149 = vpop.f32.mrf.mxu0
    %v1150 = vadd.f32 0.0, %v1149
    %v1151 = vpop.f32.mrf.mxu0
    %1152 = vdwg.mxu0
    %v1153 = vadd.f32 %v1096, %v1111
    %v1154 = vadd.f32 %v1097, %v1124
    %v1155 = vadd.f32 %v1098, %v1137
    %v1156 = vadd.f32 %v1099, %v1150
    %v1157 = vxor.u32 %v1153, 2147483648
    %v1158 = vxor.u32 %v1154, 2147483648
    %v1159 = vxor.u32 %v1155, 2147483648
    %v1160 = vmul.f32 %v1157, 1.442695
    %v1161 = vpow.pop %v1160
    %v1162 = vmul.f32 %v1158, 1.442695
    %v1163 = vpow.pop %v1162
    %v1164 = vmul.f32 %v1159, 1.442695
    %v1165 = vpow.pop %v1164
    %v1166 = vadd.f32 %v1161, 1.0
    %v1167 = vadd.f32 %v1163, 1.0
    %v1168 = vadd.f32 %v1165, 1.0
    %v1169 = vrcp.pop %v1166
    %v1170 = vmul.f32 %v1166, %v1169
    %v1171 = vsub.f32 1.0, %v1170
    %v1172 = vmul.f32 %v1169, %v1171
    %v1173 = vadd.f32 %v1169, %v1172
    %vm1174 = vweird.f32 %v1166
    %vm1175 = vweird.f32 %v1169
    %vm1176 = vmor %vm1174, %vm1175
    %v1177 = vsel %vm1176, %v1169, %v1173
    %v1178 = vand.u32 2147483647, %v1166
    %vm1179 = vcmp.eq.f32.partialorder %v1178, 8.507059e+37
    %v1180 = vand.u32 %v1166, 2147483648
    %v1181 = vor.u32 1.1754944e-38, %v1180
    %v1182 = vsel %vm1179, %v1181, %v1177
    %v1183 = vmul.f32 1.0, %v1182
    %v1184 = vrcp.pop %v1167
    %v1185 = vmul.f32 %v1167, %v1184
    %v1186 = vsub.f32 1.0, %v1185
    %v1187 = vmul.f32 %v1184, %v1186
    %v1188 = vadd.f32 %v1184, %v1187
    %vm1189 = vweird.f32 %v1167
    %vm1190 = vweird.f32 %v1184
    %vm1191 = vmor %vm1189, %vm1190
    %v1192 = vsel %vm1191, %v1184, %v1188
    %v1193 = vand.u32 2147483647, %v1167
    %vm1194 = vcmp.eq.f32.partialorder %v1193, 8.507059e+37
    %v1195 = vand.u32 %v1167, 2147483648
    %v1196 = vor.u32 1.1754944e-38, %v1195
    %v1197 = vsel %vm1194, %v1196, %v1192
    %v1198 = vmul.f32 1.0, %v1197
    %v1199 = vrcp.pop %v1168
    %v1200 = vmul.f32 %v1168, %v1199
    %v1201 = vsub.f32 1.0, %v1200
    %v1202 = vmul.f32 %v1199, %v1201
    %v1203 = vadd.f32 %v1199, %v1202
    %vm1204 = vweird.f32 %v1168
    %vm1205 = vweird.f32 %v1199
    %vm1206 = vmor %vm1204, %vm1205
    %v1207 = vsel %vm1206, %v1199, %v1203
    %v1208 = vand.u32 2147483647, %v1168
    %vm1209 = vcmp.eq.f32.partialorder %v1208, 8.507059e+37
    %v1210 = vand.u32 %v1168, 2147483648
    %v1211 = vor.u32 1.1754944e-38, %v1210
    %v1212 = vsel %vm1209, %v1211, %v1207
    %v1213 = vmul.f32 1.0, %v1212
    %v1214 = vtanh.pop %v1156
    %v1215 = vmul.f32 %v1093, %v1198
    %v1216 = vmul.f32 %v1183, %v1214
    %v1217 = vadd.f32 %v1215, %v1216
    %v1218 = vtanh.pop %v1217
    %v1219 = vmul.f32 %v1213, %v1218
    %v1220 = vld [vmem:[#allocation2 + $0xa0] sm:$0xff]
    %v1221 = vld [vmem:[#allocation2 + $0xa8] sm:$0xff]
    %v1222 = vld [vmem:[#allocation2 + $0xb0] sm:$0xff]
    %v1223 = vld [vmem:[#allocation2 + $0xb8] sm:$0xff]
    %v1224 = vpack.c.bf16 %v1219, %v1219
    %1225 = vmatpush.bf16.msra.mxu0 %v569
    %1226 = vmatpush.bf16.msra.mxu0 %v565
    %1227 = vmatpush.bf16.msra.mxu0 %v561
    %1228 = vmatpush.bf16.msra.mxu0 %v557
    %1229 = vmatpush.bf16.msra.mxu0 %v553
    %1230 = vmatpush.bf16.msra.mxu0 %v549
    %1231 = vmatpush.bf16.msra.mxu0 %v545
    %1232 = vmatpush.bf16.msra.mxu0 %v541
    %1233 = vmatmul.bf16.gmra.mxu0 %v1224
    %v1234 = vpop.f32.mrf.mxu0
    %v1235 = vadd.f32 0.0, %v1234
    %v1236 = vpop.f32.mrf.mxu0
    %1237 = vdwg.mxu0
    %1238 = vmatpush.bf16.msra.mxu0 %v570
    %1239 = vmatpush.bf16.msra.mxu0 %v566
    %1240 = vmatpush.bf16.msra.mxu0 %v562
    %1241 = vmatpush.bf16.msra.mxu0 %v558
    %1242 = vmatpush.bf16.msra.mxu0 %v554
    %1243 = vmatpush.bf16.msra.mxu0 %v550
    %1244 = vmatpush.bf16.msra.mxu0 %v546
    %1245 = vmatpush.bf16.msra.mxu0 %v542
    %1246 = vmatmul.bf16.gmra.mxu0 %v1224
    %v1247 = vpop.f32.mrf.mxu0
    %v1248 = vadd.f32 0.0, %v1247
    %v1249 = vpop.f32.mrf.mxu0
    %1250 = vdwg.mxu0
    %1251 = vmatpush.bf16.msra.mxu0 %v571
    %1252 = vmatpush.bf16.msra.mxu0 %v567
    %1253 = vmatpush.bf16.msra.mxu0 %v563
    %1254 = vmatpush.bf16.msra.mxu0 %v559
    %1255 = vmatpush.bf16.msra.mxu0 %v555
    %1256 = vmatpush.bf16.msra.mxu0 %v551
    %1257 = vmatpush.bf16.msra.mxu0 %v547
    %1258 = vmatpush.bf16.msra.mxu0 %v543
    %1259 = vmatmul.bf16.gmra.mxu0 %v1224
    %v1260 = vpop.f32.mrf.mxu0
    %v1261 = vadd.f32 0.0, %v1260
    %v1262 = vpop.f32.mrf.mxu0
    %1263 = vdwg.mxu0
    %1264 = vmatpush.bf16.msra.mxu0 %v572
    %1265 = vmatpush.bf16.msra.mxu0 %v568
    %1266 = vmatpush.bf16.msra.mxu0 %v564
    %1267 = vmatpush.bf16.msra.mxu0 %v560
    %1268 = vmatpush.bf16.msra.mxu0 %v556
    %1269 = vmatpush.bf16.msra.mxu0 %v552
    %1270 = vmatpush.bf16.msra.mxu0 %v548
    %1271 = vmatpush.bf16.msra.mxu0 %v544
    %1272 = vmatmul.bf16.gmra.mxu0 %v1224
    %v1273 = vpop.f32.mrf.mxu0
    %v1274 = vadd.f32 0.0, %v1273
    %v1275 = vpop.f32.mrf.mxu0
    %1276 = vdwg.mxu0
    %v1277 = vadd.f32 %v1220, %v1235
    %v1278 = vadd.f32 %v1221, %v1248
    %v1279 = vadd.f32 %v1222, %v1261
    %v1280 = vadd.f32 %v1223, %v1274
    %v1281 = vxor.u32 %v1277, 2147483648
    %v1282 = vxor.u32 %v1278, 2147483648
    %v1283 = vxor.u32 %v1279, 2147483648
    %v1284 = vmul.f32 %v1281, 1.442695
    %v1285 = vpow.pop %v1284
    %v1286 = vmul.f32 %v1282, 1.442695
    %v1287 = vpow.pop %v1286
    %v1288 = vmul.f32 %v1283, 1.442695
    %v1289 = vpow.pop %v1288
    %v1290 = vadd.f32 %v1285, 1.0
    %v1291 = vadd.f32 %v1287, 1.0
    %v1292 = vadd.f32 %v1289, 1.0
    %v1293 = vrcp.pop %v1290
    %v1294 = vmul.f32 %v1290, %v1293
    %v1295 = vsub.f32 1.0, %v1294
    %v1296 = vmul.f32 %v1293, %v1295
    %v1297 = vadd.f32 %v1293, %v1296
    %vm1298 = vweird.f32 %v1290
    %vm1299 = vweird.f32 %v1293
    %vm1300 = vmor %vm1298, %vm1299
    %v1301 = vsel %vm1300, %v1293, %v1297
    %v1302 = vand.u32 2147483647, %v1290
    %vm1303 = vcmp.eq.f32.partialorder %v1302, 8.507059e+37
    %v1304 = vand.u32 %v1290, 2147483648
    %v1305 = vor.u32 1.1754944e-38, %v1304
    %v1306 = vsel %vm1303, %v1305, %v1301
    %v1307 = vmul.f32 1.0, %v1306
    %v1308 = vrcp.pop %v1291
    %v1309 = vmul.f32 %v1291, %v1308
    %v1310 = vsub.f32 1.0, %v1309
    %v1311 = vmul.f32 %v1308, %v1310
    %v1312 = vadd.f32 %v1308, %v1311
    %vm1313 = vweird.f32 %v1291
    %vm1314 = vweird.f32 %v1308
    %vm1315 = vmor %vm1313, %vm1314
    %v1316 = vsel %vm1315, %v1308, %v1312
    %v1317 = vand.u32 2147483647, %v1291
    %vm1318 = vcmp.eq.f32.partialorder %v1317, 8.507059e+37
    %v1319 = vand.u32 %v1291, 2147483648
    %v1320 = vor.u32 1.1754944e-38, %v1319
    %v1321 = vsel %vm1318, %v1320, %v1316
    %v1322 = vmul.f32 1.0, %v1321
    %v1323 = vrcp.pop %v1292
    %v1324 = vmul.f32 %v1292, %v1323
    %v1325 = vsub.f32 1.0, %v1324
    %v1326 = vmul.f32 %v1323, %v1325
    %v1327 = vadd.f32 %v1323, %v1326
    %vm1328 = vweird.f32 %v1292
    %vm1329 = vweird.f32 %v1323
    %vm1330 = vmor %vm1328, %vm1329
    %v1331 = vsel %vm1330, %v1323, %v1327
    %v1332 = vand.u32 2147483647, %v1292
    %vm1333 = vcmp.eq.f32.partialorder %v1332, 8.507059e+37
    %v1334 = vand.u32 %v1292, 2147483648
    %v1335 = vor.u32 1.1754944e-38, %v1334
    %v1336 = vsel %vm1333, %v1335, %v1331
    %v1337 = vmul.f32 1.0, %v1336
    %v1338 = vtanh.pop %v1280
    %v1339 = vmul.f32 %v1217, %v1322
    %v1340 = vmul.f32 %v1307, %v1338
    %v1341 = vadd.f32 %v1339, %v1340
    %v1342 = vtanh.pop %v1341
    %v1343 = vmul.f32 %v1337, %v1342
    %v1344 = vld [vmem:[#allocation2 + $0xc0] sm:$0xff]
    %v1345 = vld [vmem:[#allocation2 + $0xc8] sm:$0xff]
    %v1346 = vld [vmem:[#allocation2 + $0xd0] sm:$0xff]
    %v1347 = vld [vmem:[#allocation2 + $0xd8] sm:$0xff]
    %v1348 = vpack.c.bf16 %v1343, %v1343
    %1349 = vmatpush.bf16.msra.mxu0 %v569
    %1350 = vmatpush.bf16.msra.mxu0 %v565
    %1351 = vmatpush.bf16.msra.mxu0 %v561
    %1352 = vmatpush.bf16.msra.mxu0 %v557
    %1353 = vmatpush.bf16.msra.mxu0 %v553
    %1354 = vmatpush.bf16.msra.mxu0 %v549
    %1355 = vmatpush.bf16.msra.mxu0 %v545
    %1356 = vmatpush.bf16.msra.mxu0 %v541
    %1357 = vmatmul.bf16.gmra.mxu0 %v1348
    %v1358 = vpop.f32.mrf.mxu0
    %v1359 = vadd.f32 0.0, %v1358
    %v1360 = vpop.f32.mrf.mxu0
    %1361 = vdwg.mxu0
    %1362 = vmatpush.bf16.msra.mxu0 %v570
    %1363 = vmatpush.bf16.msra.mxu0 %v566
    %1364 = vmatpush.bf16.msra.mxu0 %v562
    %1365 = vmatpush.bf16.msra.mxu0 %v558
    %1366 = vmatpush.bf16.msra.mxu0 %v554
    %1367 = vmatpush.bf16.msra.mxu0 %v550
    %1368 = vmatpush.bf16.msra.mxu0 %v546
    %1369 = vmatpush.bf16.msra.mxu0 %v542
    %1370 = vmatmul.bf16.gmra.mxu0 %v1348
    %v1371 = vpop.f32.mrf.mxu0
    %v1372 = vadd.f32 0.0, %v1371
    %v1373 = vpop.f32.mrf.mxu0
    %1374 = vdwg.mxu0
    %1375 = vmatpush.bf16.msra.mxu0 %v571
    %1376 = vmatpush.bf16.msra.mxu0 %v567
    %1377 = vmatpush.bf16.msra.mxu0 %v563
    %1378 = vmatpush.bf16.msra.mxu0 %v559
    %1379 = vmatpush.bf16.msra.mxu0 %v555
    %1380 = vmatpush.bf16.msra.mxu0 %v551
    %1381 = vmatpush.bf16.msra.mxu0 %v547
    %1382 = vmatpush.bf16.msra.mxu0 %v543
    %1383 = vmatmul.bf16.gmra.mxu0 %v1348
    %v1384 = vpop.f32.mrf.mxu0
    %v1385 = vadd.f32 0.0, %v1384
    %v1386 = vpop.f32.mrf.mxu0
    %1387 = vdwg.mxu0
    %1388 = vmatpush.bf16.msra.mxu0 %v572
    %1389 = vmatpush.bf16.msra.mxu0 %v568
    %1390 = vmatpush.bf16.msra.mxu0 %v564
    %1391 = vmatpush.bf16.msra.mxu0 %v560
    %1392 = vmatpush.bf16.msra.mxu0 %v556
    %1393 = vmatpush.bf16.msra.mxu0 %v552
    %1394 = vmatpush.bf16.msra.mxu0 %v548
    %1395 = vmatpush.bf16.msra.mxu0 %v544
    %1396 = vmatmul.bf16.gmra.mxu0 %v1348
    %v1397 = vpop.f32.mrf.mxu0
    %v1398 = vadd.f32 0.0, %v1397
    %v1399 = vpop.f32.mrf.mxu0
    %1400 = vdwg.mxu0
    %v1401 = vadd.f32 %v1344, %v1359
    %v1402 = vadd.f32 %v1345, %v1372
    %v1403 = vadd.f32 %v1346, %v1385
    %v1404 = vadd.f32 %v1347, %v1398
    %v1405 = vxor.u32 %v1401, 2147483648
    %v1406 = vxor.u32 %v1402, 2147483648
    %v1407 = vxor.u32 %v1403, 2147483648
    %v1408 = vmul.f32 %v1405, 1.442695
    %v1409 = vpow.pop %v1408
    %v1410 = vmul.f32 %v1406, 1.442695
    %v1411 = vpow.pop %v1410
    %v1412 = vmul.f32 %v1407, 1.442695
    %v1413 = vpow.pop %v1412
    %v1414 = vadd.f32 %v1409, 1.0
    %v1415 = vadd.f32 %v1411, 1.0
    %v1416 = vadd.f32 %v1413, 1.0
    %v1417 = vrcp.pop %v1414
    %v1418 = vmul.f32 %v1414, %v1417
    %v1419 = vsub.f32 1.0, %v1418
    %v1420 = vmul.f32 %v1417, %v1419
    %v1421 = vadd.f32 %v1417, %v1420
    %vm1422 = vweird.f32 %v1414
    %vm1423 = vweird.f32 %v1417
    %vm1424 = vmor %vm1422, %vm1423
    %v1425 = vsel %vm1424, %v1417, %v1421
    %v1426 = vand.u32 2147483647, %v1414
    %vm1427 = vcmp.eq.f32.partialorder %v1426, 8.507059e+37
    %v1428 = vand.u32 %v1414, 2147483648
    %v1429 = vor.u32 1.1754944e-38, %v1428
    %v1430 = vsel %vm1427, %v1429, %v1425
    %v1431 = vmul.f32 1.0, %v1430
    %v1432 = vrcp.pop %v1415
    %v1433 = vmul.f32 %v1415, %v1432
    %v1434 = vsub.f32 1.0, %v1433
    %v1435 = vmul.f32 %v1432, %v1434
    %v1436 = vadd.f32 %v1432, %v1435
    %vm1437 = vweird.f32 %v1415
    %vm1438 = vweird.f32 %v1432
    %vm1439 = vmor %vm1437, %vm1438
    %v1440 = vsel %vm1439, %v1432, %v1436
    %v1441 = vand.u32 2147483647, %v1415
    %vm1442 = vcmp.eq.f32.partialorder %v1441, 8.507059e+37
    %v1443 = vand.u32 %v1415, 2147483648
    %v1444 = vor.u32 1.1754944e-38, %v1443
    %v1445 = vsel %vm1442, %v1444, %v1440
    %v1446 = vmul.f32 1.0, %v1445
    %v1447 = vrcp.pop %v1416
    %v1448 = vmul.f32 %v1416, %v1447
    %v1449 = vsub.f32 1.0, %v1448
    %v1450 = vmul.f32 %v1447, %v1449
    %v1451 = vadd.f32 %v1447, %v1450
    %vm1452 = vweird.f32 %v1416
    %vm1453 = vweird.f32 %v1447
    %vm1454 = vmor %vm1452, %vm1453
    %v1455 = vsel %vm1454, %v1447, %v1451
    %v1456 = vand.u32 2147483647, %v1416
    %vm1457 = vcmp.eq.f32.partialorder %v1456, 8.507059e+37
    %v1458 = vand.u32 %v1416, 2147483648
    %v1459 = vor.u32 1.1754944e-38, %v1458
    %v1460 = vsel %vm1457, %v1459, %v1455
    %v1461 = vmul.f32 1.0, %v1460
    %v1462 = vtanh.pop %v1404
    %v1463 = vmul.f32 %v1341, %v1446
    %v1464 = vmul.f32 %v1431, %v1462
    %v1465 = vadd.f32 %v1463, %v1464
    %v1466 = vtanh.pop %v1465
    %v1467 = vmul.f32 %v1461, %v1466
    %v1468 = vld [vmem:[%s4] sm:$0xff]
    %v1469 = vld [vmem:[%s4 + $0x8] sm:$0xff]
    %v1470 = vld [vmem:[%s4 + $0x10] sm:$0xff]
    %v1471 = vld [vmem:[%s4 + $0x18] sm:$0xff]
    %v1472 = vld [vmem:[%s4 + $0x20] sm:$0xff]
    %v1473 = vld [vmem:[%s4 + $0x28] sm:$0xff]
    %v1474 = vld [vmem:[%s4 + $0x30] sm:$0xff]
    %v1475 = vld [vmem:[%s4 + $0x38] sm:$0xff]
    %v1476 = vld [vmem:[%s4 + $0x40] sm:$0xff]
    %v1477 = vld [vmem:[%s4 + $0x48] sm:$0xff]
    %v1478 = vld [vmem:[%s4 + $0x50] sm:$0xff]
    %v1479 = vld [vmem:[%s4 + $0x58] sm:$0xff]
    %v1480 = vld [vmem:[%s4 + $0x60] sm:$0xff]
    %v1481 = vld [vmem:[%s4 + $0x68] sm:$0xff]
    %v1482 = vld [vmem:[%s4 + $0x70] sm:$0xff]
    %v1483 = vld [vmem:[%s4 + $0x78] sm:$0xff]
    %v1484 = vld [vmem:[%s5] sm:$0x1]
    %v1486 = vperm.slane %v1484, 0
    %1488 = vmatpush.msra.mxu0 %v1483
    %1489 = vmatpush.msra.mxu0 %v1482
    %1490 = vmatpush.msra.mxu0 %v1481
    %1491 = vmatpush.msra.mxu0 %v1480
    %1492 = vmatpush.msra.mxu0 %v1479
    %1493 = vmatpush.msra.mxu0 %v1478
    %1494 = vmatpush.msra.mxu0 %v1477
    %1495 = vmatpush.msra.mxu0 %v1476
    %1496 = vmatpush.msra.mxu0 %v1475
    %1497 = vmatpush.msra.mxu0 %v1474
    %1498 = vmatpush.msra.mxu0 %v1473
    %1499 = vmatpush.msra.mxu0 %v1472
    %1500 = vmatpush.msra.mxu0 %v1471
    %1501 = vmatpush.msra.mxu0 %v1470
    %1502 = vmatpush.msra.mxu0 %v1469
    %1503 = vmatpush.msra.mxu0 %v1468
    %1504 = vmatmul.f32.gmra.mxu0 %v1467
    %v1505 = vpop.f32.mrf.mxu0
    %v1506 = vadd.f32 %v1486, %v1505
    %1507 = vdwg.mxu0
    %1508 = vst [vmem:[#allocation8] sm:$0xff] %v1506
    // Predicated region
    $region34: #{lstm_model_forward.1} parent=1 // pred_check
      _
    $region35: #{lstm_model_forward.1} parent=1 // pred_check_branch
      %1510 = sbr.rel (0) target = $region37
    $region36: #{lstm_model_forward.1} parent=1 // pred_region
      %1512 = vsyncadd [#allocation5], 0
      %s1514 = sshll.u32 [#allocation8], 4
      %s1515 = int_to_ptr.vmem [resolvable:$true] %s1514
      %s1516 = sshll.u32 %s6, 4
      %s1517 = int_to_ptr.hbm [resolvable:$true] %s1516
      %1519 = dma.vmem_to_hbm [thread:$0]  %s1515, 128, %s1517, [#allocation5]
    $region37: #{lstm_model_forward.1} parent=1 // pred_fallthru
      _
    // Predicated region
    $region38: #{lstm_model_forward.1} parent=1 // pred_check
      _
    $region39: #{lstm_model_forward.1} parent=1 // pred_check_branch
      %1521 = sbr.rel (0) target = $region41
    $region40: #{lstm_model_forward.1} parent=1 // pred_region
      %1523 = dma.done [#allocation5], 128
    $region41: #{lstm_model_forward.1} parent=1 // pred_fallthru
      _
    %1524 = vsyncpa [#allocation4], 1
    %1525 = vsyncpa [#allocation7], 1
    %1526 = vsyncpa [#allocation5], 1

</llo_original>
